<compile_context>
chip_gen: v7x
topology: tpu7x:2x2x1
jax: 0.10.0
libtpu: 0.0.40
codegen_flags: <defaults>
</compile_context>

<pallas_src>
import math
import functools

import jax
import jax.numpy as jnp
from jax import lax
from jax.experimental import pallas as pl
from jax.experimental.pallas import tpu as pltpu


# ----------------------------------------------------------------------------
# Fused kernel: one (batch, query-tile) grid point.
# ----------------------------------------------------------------------------
def _mha_fused_kernel(x_ref, wq_ref, bq_ref, wkv_ref, bkv_ref, wp_ref, bp_ref,
                      *rest, num_heads, head_dim, emit_attn):
    if emit_attn:
        y_ref, attn_ref, kv_scr, o_scr = rest
    else:
        y_ref, kv_scr, o_scr = rest
        attn_ref = None

    E = num_heads * head_dim
    tq = y_ref.shape[0]
    qi = pl.program_id(1)

    # --- K/V projection: computed once per batch element (qi == 0), kept in
    #     VMEM scratch and reused by every query tile of this batch. ---------
    @pl.when(qi == 0)
    def _():
        kv = jnp.dot(x_ref[...], wkv_ref[...],
                     preferred_element_type=jnp.float32) + bkv_ref[...]
        kv_scr[...] = kv.astype(kv_scr.dtype)                   # (S, 2E) bf16

    # --- Q projection for this query tile.  Query rows come from the already
    #     resident full-sequence x block (no duplicate x input). -------------
    q_start = pl.multiple_of(qi * tq, tq)
    xq = x_ref[pl.ds(q_start, tq), :]                           # (tq, E) bf16
    q_all = jnp.dot(xq, wq_ref[...],
                    preferred_element_type=jnp.float32) + bq_ref[...]
    q_all = q_all.astype(jnp.bfloat16)                          # MXU operand

    # --- Per-head attention; head outputs staged into o_scr columns. --------
    # NOTE: softmax arithmetic stays f32 (safe on v5e; see review for optional
    # bf16 exp on v6e/v7x).
    for h in range(num_heads):                  # static unroll, static slices
        sl = slice(h * head_dim, (h + 1) * head_dim)
        q_h = q_all[:, sl]                                      # (tq, Dh) bf16
        k_h = kv_scr[:, sl]                                     # (S,  Dh) bf16
        v_h = kv_scr[:, E + h * head_dim: E + (h + 1) * head_dim]

        # scores = q_h @ k_h^T (1/sqrt(Dh) already folded into Wq/bq)
        s = lax.dot_general(q_h, k_h, (((1,), (1,)), ((), ())),
                            preferred_element_type=jnp.float32)  # (tq, S)
        s = s - jnp.max(s, axis=-1, keepdims=True)
        p = jnp.exp(s)
        denom = jnp.sum(p, axis=-1, keepdims=True)
        if attn_ref is not None:
            p = p / denom                       # exact: exported rows sum to 1
            attn_ref[h, :, :] = p.astype(attn_ref.dtype)
        else:
            p = p * pl.reciprocal(denom, approx=True)            # EUP slot

        o_h = jnp.dot(p.astype(jnp.bfloat16), v_h,
                      preferred_element_type=jnp.float32)        # (tq, Dh)
        o_scr[:, sl] = o_h.astype(o_scr.dtype)

    # --- Single wide output projection (K = E) + bias. -----------------------
    y = jnp.dot(o_scr[...], wp_ref[...],
                preferred_element_type=jnp.float32) + bp_ref[...]
    y_ref[...] = y.astype(y_ref.dtype)
    # dropout on the projected output is identity (eval mode)


# ----------------------------------------------------------------------------
# VMEM budgeting: pick tq from an explicit per-generation budget.
# ----------------------------------------------------------------------------
def _vmem_budget_bytes():
    try:
        info = pltpu.get_tpu_info()
        cap = getattr(info, "vmem_capacity_bytes", None) or (64 << 20)
    except Exception:
        cap = 64 << 20                      # conservative (v7x-sized) fallback
    return int(cap * 0.75)


def _vmem_bytes_estimate(S, E, H, tq, emit_attn):
    bf16, f32 = 2, 4
    b = 2 * S * E * bf16                                # x block (dbl-buffered)
    b += (E * E + E * 2 * E + E * E) * bf16             # weight slabs (single)
    b += (E + 2 * E + E) * f32                          # biases
    b += S * 2 * E * bf16                               # kv scratch
    b += tq * E * bf16                                  # o_all scratch
    b += 2 * tq * E * f32                               # y out block (dbl)
    b += tq * E * f32 + 2 * tq * S * f32                # q_all + scores/probs
    if emit_attn:
        b += 2 * H * tq * S * f32                       # attn out block (dbl)
    return b


def _choose_tq(S, E, H, emit_attn, budget):
    # tq must divide S (or equal S) so in-kernel pl.ds reads of the resident
    # x block and the attention writes always stay in-bounds.
    if S <= 512 and _vmem_bytes_estimate(S, E, H, S, emit_attn) <= budget:
        return S
    for cand in (512, 384, 256, 192, 128, 64, 32, 16, 8):
        if S % cand == 0 and _vmem_bytes_estimate(S, E, H, cand, emit_attn) <= budget:
            return cand
    for cand in (8, 16, 32, 64, 128, 256, 512):         # smallest valid divisor
        if S % cand == 0:
            return cand
    return S                                            # degenerate fallback


# ----------------------------------------------------------------------------
# Wrapper: parameter fusion (pure layout work) + pallas_call
# ----------------------------------------------------------------------------
def multi_head_attention_forward(x, params, attention_outputs=True):
    """x: (B, S, E).  Returns (projected (B,S,E), attn (B, H*S, S) or None)."""
    B, S, E = x.shape
    H, _, Dh = params["wq"].shape
    assert H * Dh == E

    scale = 1.0 / math.sqrt(Dh)
    # Wide (E, H*Dh) slabs in "x @ W" orientation, bf16 for the MXU; the
    # softmax scale is folded into the Q projection.  Biases stay f32.
    wq = (jnp.transpose(params["wq"], (1, 0, 2)).reshape(E, E)
          * scale).astype(jnp.bfloat16)
    bq = (params["bq"].reshape(1, E) * scale).astype(jnp.float32)
    wk = jnp.transpose(params["wk"], (1, 0, 2)).reshape(E, E)
    wv = jnp.transpose(params["wv"], (1, 0, 2)).reshape(E, E)
    wkv = jnp.concatenate([wk, wv], axis=1).astype(jnp.bfloat16)      # (E, 2E)
    bkv = jnp.concatenate([params["bk"].reshape(1, E),
                           params["bv"].reshape(1, E)],
                          axis=1).astype(jnp.float32)                 # (1, 2E)
    wp = params["wp"].astype(jnp.bfloat16)                            # (E, E)
    bp = params["bp"].reshape(1, E).astype(jnp.float32)               # (1, E)

    x_bf = x.astype(jnp.bfloat16)

    budget = _vmem_budget_bytes()
    tq = _choose_tq(S, E, H, attention_outputs, budget)
    nq = pl.cdiv(S, tq)                       # exact: tq divides S (or tq == S)

    # Weight / bias blocks never change across the grid -> single-buffer them.
    const_buf = pl.Buffered(1)

    x_spec = pl.BlockSpec((pl.Squeezed(), S, E), lambda b, qi: (b, 0, 0))
    wq_spec = pl.BlockSpec((E, E), lambda b, qi: (0, 0), pipeline_mode=const_buf)
    bq_spec = pl.BlockSpec((1, E), lambda b, qi: (0, 0), pipeline_mode=const_buf)
    wkv_spec = pl.BlockSpec((E, 2 * E), lambda b, qi: (0, 0), pipeline_mode=const_buf)
    bkv_spec = pl.BlockSpec((1, 2 * E), lambda b, qi: (0, 0), pipeline_mode=const_buf)
    wp_spec = pl.BlockSpec((E, E), lambda b, qi: (0, 0), pipeline_mode=const_buf)
    bp_spec = pl.BlockSpec((1, E), lambda b, qi: (0, 0), pipeline_mode=const_buf)
    y_spec = pl.BlockSpec((pl.Squeezed(), tq, E), lambda b, qi: (b, qi, 0))

    kernel = functools.partial(_mha_fused_kernel, num_heads=H, head_dim=Dh,
                               emit_attn=attention_outputs)

    if attention_outputs:
        out_shape = (jax.ShapeDtypeStruct((B, S, E), x.dtype),
                     jax.ShapeDtypeStruct((B, H, S, S), jnp.float32))
        out_specs = (y_spec,
                     pl.BlockSpec((pl.Squeezed(), H, tq, S),
                                  lambda b, qi: (b, 0, qi, 0)))
    else:
        out_shape = jax.ShapeDtypeStruct((B, S, E), x.dtype)
        out_specs = y_spec

    result = pl.pallas_call(
        kernel,
        out_shape=out_shape,
        grid_spec=pltpu.PrefetchScalarGridSpec(
            num_scalar_prefetch=0,
            grid=(B, nq),
            in_specs=[x_spec, wq_spec, bq_spec, wkv_spec, bkv_spec,
                      wp_spec, bp_spec],
            out_specs=out_specs,
            scratch_shapes=[
                pltpu.VMEM((S, 2 * E), jnp.bfloat16),   # K|V per batch element
                pltpu.VMEM((tq, E), jnp.bfloat16),      # per-tile head outputs
            ]),
        compiler_params=pltpu.CompilerParams(
            # qi carries the K/V scratch across query tiles -> "arbitrary";
            # batch axis is megacore-parallel.
            dimension_semantics=("parallel", "arbitrary"),
            vmem_limit_bytes=budget),
    )(x_bf, wq, bq, wkv, bkv, wp, bp)

    if not attention_outputs:
        return result, None

    projected, attn4 = result
    # torch.cat of per-head (B,S,S) tensors along dim=1 -> (B, H*S, S)
    return projected, attn4.reshape(B, H * S, S)


# ----------------------------------------------------------------------------
# Deterministic parameter init (shapes dictated by the module's __init__)
# ----------------------------------------------------------------------------
def init_params(key, embed_dim, num_heads):
    assert embed_dim % num_heads == 0
    head_dim = embed_dim // num_heads
    ks = jax.random.split(key, 8)
    scale = 1.0 / math.sqrt(embed_dim)

    def w(k, shape):
        return jax.random.uniform(k, shape, jnp.float32, -1.0, 1.0) * scale

    return {
        "wq": w(ks[0], (num_heads, embed_dim, head_dim)),
        "bq": w(ks[1], (num_heads, head_dim)),
        "wk": w(ks[2], (num_heads, embed_dim, head_dim)),
        "bk": w(ks[3], (num_heads, head_dim)),
        "wv": w(ks[4], (num_heads, embed_dim, head_dim)),
        "bv": w(ks[5], (num_heads, head_dim)),
        "wp": w(ks[6], (embed_dim, embed_dim)),
        "bp": w(ks[7], (1, embed_dim)),
    }


# ----------------------------------------------------------------------------
# Pure-JAX reference (mirrors the PyTorch module exactly, f32 throughout)
# ----------------------------------------------------------------------------
def reference_forward(x, params):
    H, _, Dh = params["wq"].shape
    outs, attns = [], []
    for h in range(H):
        q = x @ params["wq"][h] + params["bq"][h]
        k = x @ params["wk"][h] + params["bk"][h]
        v = x @ params["wv"][h] + params["bv"][h]
        s = (q @ jnp.swapaxes(k, -1, -2)) / math.sqrt(Dh)
        p = jax.nn.softmax(s, axis=-1)
        outs.append(p @ v)
        attns.append(p)
    cat = jnp.concatenate(outs, axis=-1)
    proj = cat @ params["wp"] + params["bp"]
    attn = jnp.concatenate(attns, axis=1)
    return proj, attn


if __name__ == "__main__":
    B, S, E, H = 2, 8, 32, 4          # batch, seq, embed_dim, num_heads
    key = jax.random.PRNGKey(0)
    kx, kp = jax.random.split(key)

    x = jax.random.normal(kx, (B, S, E), dtype=jnp.float32)
    params = init_params(kp, E, H)

    proj, attn = multi_head_attention_forward(x, params, attention_outputs=True)
    proj = jax.block_until_ready(proj)
    attn = jax.block_until_ready(attn)

    proj_no, attn_no = multi_head_attention_forward(x, params, attention_outputs=False)
    proj_no = jax.block_until_ready(proj_no)

    ref_proj, ref_attn = reference_forward(x, params)

    assert proj.shape == (B, S, E)
    assert attn.shape == (B, H * S, S)
    assert attn_no is None
    # Exported probabilities use an exact reciprocal -> rows sum to 1.
    assert jnp.allclose(jnp.sum(attn, axis=-1), 1.0, atol=1e-3)
    # Tolerances relaxed for bf16 MXU operands (f32 accumulation everywhere).
    assert jnp.allclose(proj, ref_proj, atol=5e-2, rtol=5e-2)
    assert jnp.allclose(attn, ref_attn, atol=5e-2, rtol=5e-2)
    assert jnp.allclose(proj_no, ref_proj, atol=5e-2, rtol=5e-2)

    print("KERNEL_OK")
</pallas_src>

<mosaic_0001>
module attributes {stable_mosaic.version = 11 : i64} {
  func.func @_mha_fused_kernel(%arg0: i32, %arg1: i32, %arg2: memref<1x8x32xbf16, #tpu.memory_space<vmem>>, %arg3: memref<32x32xbf16, #tpu.memory_space<vmem>>, %arg4: memref<1x32xf32, #tpu.memory_space<vmem>>, %arg5: memref<32x64xbf16, #tpu.memory_space<vmem>>, %arg6: memref<1x64xf32, #tpu.memory_space<vmem>>, %arg7: memref<32x32xbf16, #tpu.memory_space<vmem>>, %arg8: memref<1x32xf32, #tpu.memory_space<vmem>>, %arg9: memref<1x8x32xf32, #tpu.memory_space<vmem>>, %arg10: memref<1x4x8x8xf32, #tpu.memory_space<vmem>>, %arg11: memref<8x64xbf16, #tpu.memory_space<vmem>>, %arg12: memref<8x32xbf16, #tpu.memory_space<vmem>>) attributes {dimension_semantics = [#tpu.dimension_semantics<parallel>, #tpu.dimension_semantics<arbitrary>], iteration_bounds = array<i64: 2, 1>, scalar_prefetch = 0 : i64, scratch_operands = 2 : i64, tpu.core_type = #tpu.core_type<tc>, window_params = [{transform_indices = @transform_0, window_bounds = array<i64: 1, 8, 32>}, {pipeline_mode = #tpu.pipeline_mode<synchronous>, transform_indices = @transform_1, window_bounds = array<i64: 32, 32>}, {pipeline_mode = #tpu.pipeline_mode<synchronous>, transform_indices = @transform_2, window_bounds = array<i64: 1, 32>}, {pipeline_mode = #tpu.pipeline_mode<synchronous>, transform_indices = @transform_3, window_bounds = array<i64: 32, 64>}, {pipeline_mode = #tpu.pipeline_mode<synchronous>, transform_indices = @transform_4, window_bounds = array<i64: 1, 64>}, {pipeline_mode = #tpu.pipeline_mode<synchronous>, transform_indices = @transform_5, window_bounds = array<i64: 32, 32>}, {pipeline_mode = #tpu.pipeline_mode<synchronous>, transform_indices = @transform_6, window_bounds = array<i64: 1, 32>}, {transform_indices = @transform_7, window_bounds = array<i64: 1, 8, 32>}, {transform_indices = @transform_8, window_bounds = array<i64: 1, 4, 8, 8>}]} {
    %c0_i32 = arith.constant 0 : i32
    %0 = arith.cmpi eq, %arg1, %c0_i32 : i32
    %1 = arith.extui %0 : i1 to i32
    %c0_i32_0 = arith.constant 0 : i32
    %2 = arith.cmpi ne, %1, %c0_i32_0 : i32
    scf.if %2 {
      %c0_62 = arith.constant 0 : index
      %c0_63 = arith.constant 0 : index
      %c0_64 = arith.constant 0 : index
      %103 = vector.load %arg2[%c0_62, %c0_63, %c0_64] : memref<1x8x32xbf16, #tpu.memory_space<vmem>>, vector<1x8x32xbf16>
      %104 = vector.shape_cast %103 : vector<1x8x32xbf16> to vector<8x32xbf16>
      %c0_65 = arith.constant 0 : index
      %c0_66 = arith.constant 0 : index
      %105 = vector.load %arg5[%c0_65, %c0_66] : memref<32x64xbf16, #tpu.memory_space<vmem>>, vector<32x64xbf16>
      %cst_67 = arith.constant dense<0.000000e+00> : vector<8x64xf32>
      %106 = tpu.matmul %104, %105, %cst_67 {dimension_numbers = #tpu.dot_dimension_numbers<[1], [0], [0], [1], [0, 0, 1, 1], [], []>} : vector<8x32xbf16>, vector<32x64xbf16>, vector<8x64xf32> -> vector<8x64xf32>
      %c0_68 = arith.constant 0 : index
      %c0_69 = arith.constant 0 : index
      %107 = vector.load %arg6[%c0_68, %c0_69] : memref<1x64xf32, #tpu.memory_space<vmem>>, vector<1x64xf32>
      %108 = vector.broadcast %107 : vector<1x64xf32> to vector<8x64xf32>
      %109 = arith.addf %106, %108 : vector<8x64xf32>
      %110 = arith.truncf %109 : vector<8x64xf32> to vector<8x64xbf16>
      %c0_70 = arith.constant 0 : index
      %c0_71 = arith.constant 0 : index
      %111 = vector.load %arg11[%c0_70, %c0_71] : memref<8x64xbf16, #tpu.memory_space<vmem>>, vector<8x64xbf16>
      tpu.vector_store %arg11[%c0_70, %c0_71], %110 {strides = array<i32>} : memref<8x64xbf16, #tpu.memory_space<vmem>>, vector<8x64xbf16>,
    } else {
    }
    %c8_i32 = arith.constant 8 : i32
    %3 = arith.muli %arg1, %c8_i32 : i32
    %4 = tpu.assume_multiple %3, 8 : i32
    %c0 = arith.constant 0 : index
    %5 = arith.index_cast %4 : i32 to index
    %c0_1 = arith.constant 0 : index
    %6 = vector.load %arg2[%c0, %5, %c0_1] : memref<1x8x32xbf16, #tpu.memory_space<vmem>>, vector<1x8x32xbf16>
    %7 = vector.shape_cast %6 : vector<1x8x32xbf16> to vector<8x32xbf16>
    %c0_2 = arith.constant 0 : index
    %c0_3 = arith.constant 0 : index
    %8 = vector.load %arg3[%c0_2, %c0_3] : memref<32x32xbf16, #tpu.memory_space<vmem>>, vector<32x32xbf16>
    %cst = arith.constant dense<0.000000e+00> : vector<8x32xf32>
    %9 = tpu.matmul %7, %8, %cst {dimension_numbers = #tpu.dot_dimension_numbers<[1], [0], [0], [1], [0, 0, 1, 1], [], []>} : vector<8x32xbf16>, vector<32x32xbf16>, vector<8x32xf32> -> vector<8x32xf32>
    %c0_4 = arith.constant 0 : index
    %c0_5 = arith.constant 0 : index
    %10 = vector.load %arg4[%c0_4, %c0_5] : memref<1x32xf32, #tpu.memory_space<vmem>>, vector<1x32xf32>
    %11 = vector.broadcast %10 : vector<1x32xf32> to vector<8x32xf32>
    %12 = arith.addf %9, %11 : vector<8x32xf32>
    %13 = arith.truncf %12 : vector<8x32xf32> to vector<8x32xbf16>
    %14 = vector.extract_strided_slice %13 {offsets = [0, 0], sizes = [8, 8], strides = [1, 1]} : vector<8x32xbf16> to vector<8x8xbf16>
    %c0_6 = arith.constant 0 : index
    %c0_7 = arith.constant 0 : index
    %15 = vector.load %arg11[%c0_6, %c0_7] : memref<8x64xbf16, #tpu.memory_space<vmem>>, vector<8x8xbf16>
    %c0_8 = arith.constant 0 : index
    %c32 = arith.constant 32 : index
    %16 = vector.load %arg11[%c0_8, %c32] : memref<8x64xbf16, #tpu.memory_space<vmem>>, vector<8x8xbf16>
    %cst_9 = arith.constant dense<0.000000e+00> : vector<8x8xf32>
    %17 = tpu.matmul %14, %15, %cst_9 {dimension_numbers = #tpu.dot_dimension_numbers<[1], [1], [0], [0], [0, 0, 1, 0], [], []>} : vector<8x8xbf16>, vector<8x8xbf16>, vector<8x8xf32> -> vector<8x8xf32>
    %cst_10 = arith.constant dense<0xFF800000> : vector<8xf32>
    %18 = vector.multi_reduction <maximumf>, %17, %cst_10 [1] : vector<8x8xf32> to vector<8xf32>
    %19 = vector.shape_cast %18 : vector<8xf32> to vector<8x1xf32>
    %20 = vector.broadcast %19 : vector<8x1xf32> to vector<8x8xf32>
    %21 = arith.subf %17, %20 : vector<8x8xf32>
    %22 = math.exp %21 : vector<8x8xf32>
    %cst_11 = arith.constant dense<0.000000e+00> : vector<8xf32>
    %23 = vector.multi_reduction <add>, %22, %cst_11 [1] : vector<8x8xf32> to vector<8xf32>
    %24 = vector.shape_cast %23 : vector<8xf32> to vector<8x1xf32>
    %25 = vector.broadcast %24 : vector<8x1xf32> to vector<8x8xf32>
    %26 = arith.divf %22, %25 : vector<8x8xf32>
    %c0_12 = arith.constant 0 : index
    %c0_13 = arith.constant 0 : index
    %c0_14 = arith.constant 0 : index
    %c0_15 = arith.constant 0 : index
    %27 = vector.load %arg10[%c0_12, %c0_13, %c0_14, %c0_15] : memref<1x4x8x8xf32, #tpu.memory_space<vmem>>, vector<1x1x8x8xf32>
    %28 = vector.shape_cast %27 : vector<1x1x8x8xf32> to vector<8x8xf32>
    %29 = vector.shape_cast %26 : vector<8x8xf32> to vector<1x1x8x8xf32>
    tpu.vector_store %arg10[%c0_12, %c0_13, %c0_14, %c0_15], %29 {strides = array<i32>} : memref<1x4x8x8xf32, #tpu.memory_space<vmem>>, vector<1x1x8x8xf32>,
    %30 = arith.truncf %26 : vector<8x8xf32> to vector<8x8xbf16>
    %cst_16 = arith.constant dense<0.000000e+00> : vector<8x8xf32>
    %31 = tpu.matmul %30, %16, %cst_16 {dimension_numbers = #tpu.dot_dimension_numbers<[1], [0], [0], [1], [0, 0, 1, 1], [], []>} : vector<8x8xbf16>, vector<8x8xbf16>, vector<8x8xf32> -> vector<8x8xf32>
    %32 = arith.truncf %31 : vector<8x8xf32> to vector<8x8xbf16>
    %c0_17 = arith.constant 0 : index
    %c0_18 = arith.constant 0 : index
    %33 = vector.load %arg12[%c0_17, %c0_18] : memref<8x32xbf16, #tpu.memory_space<vmem>>, vector<8x8xbf16>
    tpu.vector_store %arg12[%c0_17, %c0_18], %32 {strides = array<i32>} : memref<8x32xbf16, #tpu.memory_space<vmem>>, vector<8x8xbf16>,
    %34 = vector.extract_strided_slice %13 {offsets = [0, 8], sizes = [8, 8], strides = [1, 1]} : vector<8x32xbf16> to vector<8x8xbf16>
    %c0_19 = arith.constant 0 : index
    %c8 = arith.constant 8 : index
    %35 = vector.load %arg11[%c0_19, %c8] : memref<8x64xbf16, #tpu.memory_space<vmem>>, vector<8x8xbf16>
    %c0_20 = arith.constant 0 : index
    %c40 = arith.constant 40 : index
    %36 = vector.load %arg11[%c0_20, %c40] : memref<8x64xbf16, #tpu.memory_space<vmem>>, vector<8x8xbf16>
    %cst_21 = arith.constant dense<0.000000e+00> : vector<8x8xf32>
    %37 = tpu.matmul %34, %35, %cst_21 {dimension_numbers = #tpu.dot_dimension_numbers<[1], [1], [0], [0], [0, 0, 1, 0], [], []>} : vector<8x8xbf16>, vector<8x8xbf16>, vector<8x8xf32> -> vector<8x8xf32>
    %cst_22 = arith.constant dense<0xFF800000> : vector<8xf32>
    %38 = vector.multi_reduction <maximumf>, %37, %cst_22 [1] : vector<8x8xf32> to vector<8xf32>
    %39 = vector.shape_cast %38 : vector<8xf32> to vector<8x1xf32>
    %40 = vector.broadcast %39 : vector<8x1xf32> to vector<8x8xf32>
    %41 = arith.subf %37, %40 : vector<8x8xf32>
    %42 = math.exp %41 : vector<8x8xf32>
    %cst_23 = arith.constant dense<0.000000e+00> : vector<8xf32>
    %43 = vector.multi_reduction <add>, %42, %cst_23 [1] : vector<8x8xf32> to vector<8xf32>
    %44 = vector.shape_cast %43 : vector<8xf32> to vector<8x1xf32>
    %45 = vector.broadcast %44 : vector<8x1xf32> to vector<8x8xf32>
    %46 = arith.divf %42, %45 : vector<8x8xf32>
    %c0_24 = arith.constant 0 : index
    %c1 = arith.constant 1 : index
    %c0_25 = arith.constant 0 : index
    %c0_26 = arith.constant 0 : index
    %47 = vector.load %arg10[%c0_24, %c1, %c0_25, %c0_26] : memref<1x4x8x8xf32, #tpu.memory_space<vmem>>, vector<1x1x8x8xf32>
    %48 = vector.shape_cast %47 : vector<1x1x8x8xf32> to vector<8x8xf32>
    %49 = vector.shape_cast %46 : vector<8x8xf32> to vector<1x1x8x8xf32>
    tpu.vector_store %arg10[%c0_24, %c1, %c0_25, %c0_26], %49 {strides = array<i32>} : memref<1x4x8x8xf32, #tpu.memory_space<vmem>>, vector<1x1x8x8xf32>,
    %50 = arith.truncf %46 : vector<8x8xf32> to vector<8x8xbf16>
    %cst_27 = arith.constant dense<0.000000e+00> : vector<8x8xf32>
    %51 = tpu.matmul %50, %36, %cst_27 {dimension_numbers = #tpu.dot_dimension_numbers<[1], [0], [0], [1], [0, 0, 1, 1], [], []>} : vector<8x8xbf16>, vector<8x8xbf16>, vector<8x8xf32> -> vector<8x8xf32>
    %52 = arith.truncf %51 : vector<8x8xf32> to vector<8x8xbf16>
    %c0_28 = arith.constant 0 : index
    %c8_29 = arith.constant 8 : index
    %53 = vector.load %arg12[%c0_28, %c8_29] : memref<8x32xbf16, #tpu.memory_space<vmem>>, vector<8x8xbf16>
    tpu.vector_store %arg12[%c0_28, %c8_29], %52 {strides = array<i32>} : memref<8x32xbf16, #tpu.memory_space<vmem>>, vector<8x8xbf16>,
    %54 = vector.extract_strided_slice %13 {offsets = [0, 16], sizes = [8, 8], strides = [1, 1]} : vector<8x32xbf16> to vector<8x8xbf16>
    %c0_30 = arith.constant 0 : index
    %c16 = arith.constant 16 : index
    %55 = vector.load %arg11[%c0_30, %c16] : memref<8x64xbf16, #tpu.memory_space<vmem>>, vector<8x8xbf16>
    %c0_31 = arith.constant 0 : index
    %c48 = arith.constant 48 : index
    %56 = vector.load %arg11[%c0_31, %c48] : memref<8x64xbf16, #tpu.memory_space<vmem>>, vector<8x8xbf16>
    %cst_32 = arith.constant dense<0.000000e+00> : vector<8x8xf32>
    %57 = tpu.matmul %54, %55, %cst_32 {dimension_numbers = #tpu.dot_dimension_numbers<[1], [1], [0], [0], [0, 0, 1, 0], [], []>} : vector<8x8xbf16>, vector<8x8xbf16>, vector<8x8xf32> -> vector<8x8xf32>
    %cst_33 = arith.constant dense<0xFF800000> : vector<8xf32>
    %58 = vector.multi_reduction <maximumf>, %57, %cst_33 [1] : vector<8x8xf32> to vector<8xf32>
    %59 = vector.shape_cast %58 : vector<8xf32> to vector<8x1xf32>
    %60 = vector.broadcast %59 : vector<8x1xf32> to vector<8x8xf32>
    %61 = arith.subf %57, %60 : vector<8x8xf32>
    %62 = math.exp %61 : vector<8x8xf32>
    %cst_34 = arith.constant dense<0.000000e+00> : vector<8xf32>
    %63 = vector.multi_reduction <add>, %62, %cst_34 [1] : vector<8x8xf32> to vector<8xf32>
    %64 = vector.shape_cast %63 : vector<8xf32> to vector<8x1xf32>
    %65 = vector.broadcast %64 : vector<8x1xf32> to vector<8x8xf32>
    %66 = arith.divf %62, %65 : vector<8x8xf32>
    %c0_35 = arith.constant 0 : index
    %c2 = arith.constant 2 : index
    %c0_36 = arith.constant 0 : index
    %c0_37 = arith.constant 0 : index
    %67 = vector.load %arg10[%c0_35, %c2, %c0_36, %c0_37] : memref<1x4x8x8xf32, #tpu.memory_space<vmem>>, vector<1x1x8x8xf32>
    %68 = vector.shape_cast %67 : vector<1x1x8x8xf32> to vector<8x8xf32>
    %69 = vector.shape_cast %66 : vector<8x8xf32> to vector<1x1x8x8xf32>
    tpu.vector_store %arg10[%c0_35, %c2, %c0_36, %c0_37], %69 {strides = array<i32>} : memref<1x4x8x8xf32, #tpu.memory_space<vmem>>, vector<1x1x8x8xf32>,
    %70 = arith.truncf %66 : vector<8x8xf32> to vector<8x8xbf16>
    %cst_38 = arith.constant dense<0.000000e+00> : vector<8x8xf32>
    %71 = tpu.matmul %70, %56, %cst_38 {dimension_numbers = #tpu.dot_dimension_numbers<[1], [0], [0], [1], [0, 0, 1, 1], [], []>} : vector<8x8xbf16>, vector<8x8xbf16>, vector<8x8xf32> -> vector<8x8xf32>
    %72 = arith.truncf %71 : vector<8x8xf32> to vector<8x8xbf16>
    %c0_39 = arith.constant 0 : index
    %c16_40 = arith.constant 16 : index
    %73 = vector.load %arg12[%c0_39, %c16_40] : memref<8x32xbf16, #tpu.memory_space<vmem>>, vector<8x8xbf16>
    tpu.vector_store %arg12[%c0_39, %c16_40], %72 {strides = array<i32>} : memref<8x32xbf16, #tpu.memory_space<vmem>>, vector<8x8xbf16>,
    %74 = vector.extract_strided_slice %13 {offsets = [0, 24], sizes = [8, 8], strides = [1, 1]} : vector<8x32xbf16> to vector<8x8xbf16>
    %c0_41 = arith.constant 0 : index
    %c24 = arith.constant 24 : index
    %75 = vector.load %arg11[%c0_41, %c24] : memref<8x64xbf16, #tpu.memory_space<vmem>>, vector<8x8xbf16>
    %c0_42 = arith.constant 0 : index
    %c56 = arith.constant 56 : index
    %76 = vector.load %arg11[%c0_42, %c56] : memref<8x64xbf16, #tpu.memory_space<vmem>>, vector<8x8xbf16>
    %cst_43 = arith.constant dense<0.000000e+00> : vector<8x8xf32>
    %77 = tpu.matmul %74, %75, %cst_43 {dimension_numbers = #tpu.dot_dimension_numbers<[1], [1], [0], [0], [0, 0, 1, 0], [], []>} : vector<8x8xbf16>, vector<8x8xbf16>, vector<8x8xf32> -> vector<8x8xf32>
    %cst_44 = arith.constant dense<0xFF800000> : vector<8xf32>
    %78 = vector.multi_reduction <maximumf>, %77, %cst_44 [1] : vector<8x8xf32> to vector<8xf32>
    %79 = vector.shape_cast %78 : vector<8xf32> to vector<8x1xf32>
    %80 = vector.broadcast %79 : vector<8x1xf32> to vector<8x8xf32>
    %81 = arith.subf %77, %80 : vector<8x8xf32>
    %82 = math.exp %81 : vector<8x8xf32>
    %cst_45 = arith.constant dense<0.000000e+00> : vector<8xf32>
    %83 = vector.multi_reduction <add>, %82, %cst_45 [1] : vector<8x8xf32> to vector<8xf32>
    %84 = vector.shape_cast %83 : vector<8xf32> to vector<8x1xf32>
    %85 = vector.broadcast %84 : vector<8x1xf32> to vector<8x8xf32>
    %86 = arith.divf %82, %85 : vector<8x8xf32>
    %c0_46 = arith.constant 0 : index
    %c3 = arith.constant 3 : index
    %c0_47 = arith.constant 0 : index
    %c0_48 = arith.constant 0 : index
    %87 = vector.load %arg10[%c0_46, %c3, %c0_47, %c0_48] : memref<1x4x8x8xf32, #tpu.memory_space<vmem>>, vector<1x1x8x8xf32>
    %88 = vector.shape_cast %87 : vector<1x1x8x8xf32> to vector<8x8xf32>
    %89 = vector.shape_cast %86 : vector<8x8xf32> to vector<1x1x8x8xf32>
    tpu.vector_store %arg10[%c0_46, %c3, %c0_47, %c0_48], %89 {strides = array<i32>} : memref<1x4x8x8xf32, #tpu.memory_space<vmem>>, vector<1x1x8x8xf32>,
    %90 = arith.truncf %86 : vector<8x8xf32> to vector<8x8xbf16>
    %cst_49 = arith.constant dense<0.000000e+00> : vector<8x8xf32>
    %91 = tpu.matmul %90, %76, %cst_49 {dimension_numbers = #tpu.dot_dimension_numbers<[1], [0], [0], [1], [0, 0, 1, 1], [], []>} : vector<8x8xbf16>, vector<8x8xbf16>, vector<8x8xf32> -> vector<8x8xf32>
    %92 = arith.truncf %91 : vector<8x8xf32> to vector<8x8xbf16>
    %c0_50 = arith.constant 0 : index
    %c24_51 = arith.constant 24 : index
    %93 = vector.load %arg12[%c0_50, %c24_51] : memref<8x32xbf16, #tpu.memory_space<vmem>>, vector<8x8xbf16>
    tpu.vector_store %arg12[%c0_50, %c24_51], %92 {strides = array<i32>} : memref<8x32xbf16, #tpu.memory_space<vmem>>, vector<8x8xbf16>,
    %c0_52 = arith.constant 0 : index
    %c0_53 = arith.constant 0 : index
    %94 = vector.load %arg12[%c0_52, %c0_53] : memref<8x32xbf16, #tpu.memory_space<vmem>>, vector<8x32xbf16>
    %c0_54 = arith.constant 0 : index
    %c0_55 = arith.constant 0 : index
    %95 = vector.load %arg7[%c0_54, %c0_55] : memref<32x32xbf16, #tpu.memory_space<vmem>>, vector<32x32xbf16>
    %cst_56 = arith.constant dense<0.000000e+00> : vector<8x32xf32>
    %96 = tpu.matmul %94, %95, %cst_56 {dimension_numbers = #tpu.dot_dimension_numbers<[1], [0], [0], [1], [0, 0, 1, 1], [], []>} : vector<8x32xbf16>, vector<32x32xbf16>, vector<8x32xf32> -> vector<8x32xf32>
    %c0_57 = arith.constant 0 : index
    %c0_58 = arith.constant 0 : index
    %97 = vector.load %arg8[%c0_57, %c0_58] : memref<1x32xf32, #tpu.memory_space<vmem>>, vector<1x32xf32>
    %98 = vector.broadcast %97 : vector<1x32xf32> to vector<8x32xf32>
    %99 = arith.addf %96, %98 : vector<8x32xf32>
    %c0_59 = arith.constant 0 : index
    %c0_60 = arith.constant 0 : index
    %c0_61 = arith.constant 0 : index
    %100 = vector.load %arg9[%c0_59, %c0_60, %c0_61] : memref<1x8x32xf32, #tpu.memory_space<vmem>>, vector<1x8x32xf32>
    %101 = vector.shape_cast %100 : vector<1x8x32xf32> to vector<8x32xf32>
    %102 = vector.shape_cast %99 : vector<8x32xf32> to vector<1x8x32xf32>
    tpu.vector_store %arg9[%c0_59, %c0_60, %c0_61], %102 {strides = array<i32>} : memref<1x8x32xf32, #tpu.memory_space<vmem>>, vector<1x8x32xf32>,
    return
  }
  func.func @transform_0(%arg0: i32, %arg1: i32) -> (i32, i32, i32) {
    %c0_i32 = arith.constant 0 : i32
    %c0_i32_0 = arith.constant 0 : i32
    %c0_i32_1 = arith.constant 0 : i32
    return %arg0, %c0_i32, %c0_i32_0 : i32, i32, i32
  }
  func.func @transform_1(%arg0: i32, %arg1: i32) -> (i32, i32) {
    %c0_i32 = arith.constant 0 : i32
    %c0_i32_0 = arith.constant 0 : i32
    %c0_i32_1 = arith.constant 0 : i32
    return %c0_i32, %c0_i32_0 : i32, i32
  }
  func.func @transform_2(%arg0: i32, %arg1: i32) -> (i32, i32) {
    %c0_i32 = arith.constant 0 : i32
    %c0_i32_0 = arith.constant 0 : i32
    %c0_i32_1 = arith.constant 0 : i32
    return %c0_i32, %c0_i32_0 : i32, i32
  }
  func.func @transform_3(%arg0: i32, %arg1: i32) -> (i32, i32) {
    %c0_i32 = arith.constant 0 : i32
    %c0_i32_0 = arith.constant 0 : i32
    %c0_i32_1 = arith.constant 0 : i32
    return %c0_i32, %c0_i32_0 : i32, i32
  }
  func.func @transform_4(%arg0: i32, %arg1: i32) -> (i32, i32) {
    %c0_i32 = arith.constant 0 : i32
    %c0_i32_0 = arith.constant 0 : i32
    %c0_i32_1 = arith.constant 0 : i32
    return %c0_i32, %c0_i32_0 : i32, i32
  }
  func.func @transform_5(%arg0: i32, %arg1: i32) -> (i32, i32) {
    %c0_i32 = arith.constant 0 : i32
    %c0_i32_0 = arith.constant 0 : i32
    %c0_i32_1 = arith.constant 0 : i32
    return %c0_i32, %c0_i32_0 : i32, i32
  }
  func.func @transform_6(%arg0: i32, %arg1: i32) -> (i32, i32) {
    %c0_i32 = arith.constant 0 : i32
    %c0_i32_0 = arith.constant 0 : i32
    %c0_i32_1 = arith.constant 0 : i32
    return %c0_i32, %c0_i32_0 : i32, i32
  }
  func.func @transform_7(%arg0: i32, %arg1: i32) -> (i32, i32, i32) {
    %c0_i32 = arith.constant 0 : i32
    %c0_i32_0 = arith.constant 0 : i32
    return %arg0, %arg1, %c0_i32 : i32, i32, i32
  }
  func.func @transform_8(%arg0: i32, %arg1: i32) -> (i32, i32, i32, i32) {
    %c0_i32 = arith.constant 0 : i32
    %c0_i32_0 = arith.constant 0 : i32
    %c0_i32_1 = arith.constant 0 : i32
    return %arg0, %c0_i32, %arg1, %c0_i32_0 : i32, i32, i32, i32
  }
}

</mosaic_0001>

<llo_original>
// kernel: tpu_custom_call.1
$region0: #{tpu_custom_call.1}
  #allocation0 [shape = 'u32[]', space=smem, size = 0x4, offset = 0x4, fixed_abs, tag = 'smem constant byte address 0x4 - core index']
  #allocation1 [shape = 'u32[144,128]{1,0:T(1,128)}', space=vmem, size = 0x12000, scoped, tag = 'internal scratch']
  #allocation2 [shape = 'bf16[8,64]{1,0:T(8,128)(2,1)}', space=vmem, size = 0x800, scoped, tag = 'scratch operand']
  #allocation3 [shape = 'bf16[8,32]{1,0:T(8,128)(2,1)}', space=vmem, size = 0x800, scoped, tag = 'scratch operand']
  %s0 = inlined_call_operand.hbm [shape: bf16[2,8,32], index: 0, kind: input, shape index: {}]
  %s1 = inlined_call_operand.hbm [shape: bf16[32,32], index: 1, kind: input, shape index: {}]
  %s2 = inlined_call_operand.vmem [shape: f32[1,32], index: 2, kind: input, shape index: {}]
  %s3 = inlined_call_operand.hbm [shape: bf16[32,64], index: 3, kind: input, shape index: {}]
  %s4 = inlined_call_operand.vmem [shape: f32[1,64], index: 4, kind: input, shape index: {}]
  %s5 = inlined_call_operand.vmem [shape: bf16[32,32], index: 5, kind: input, shape index: {}]
  %s6 = inlined_call_operand.vmem [shape: f32[1,32], index: 6, kind: input, shape index: {}]
  %s7 = inlined_call_operand.hbm [shape: f32[2,8,32], index: 7, kind: output, shape index: {0}]
  %s8 = inlined_call_operand.hbm [shape: f32[2,4,8,8], index: 8, kind: output, shape index: {1}]
  %9 = xla_tuple %s7, %s8
  %s10 = sld [smem:[#allocation0]]
  $region85: #{tpu_custom_call.1} parent=0
    _
  %s12 = ssub.s32 1, %s10
  %s13 = scalar_select 0, %s12, %s10
  $region1: #{tpu_custom_call.1} parent=0
    #allocation4 [shape = 'u8[4096]{0}', space=vmem, size = 0x1000, scoped, tag = 'input window, operand 0']
    #allocation5 [shape = 's32[2]{0}', space=sflag, size = 0x8, scoped, tag = 'scoped memory for tpu_custom_call.1']
    #allocation6 [shape = 's32[2]{0}', space=sflag, size = 0x8, scoped, tag = 'scoped memory for tpu_custom_call.1']
    #allocation7 [shape = 'u8[8192]{0}', space=vmem, size = 0x2000, scoped, tag = 'input window, operand 1, single buffered']
    #allocation8 [shape = 's32[1]{0}', space=sflag, size = 0x4, scoped, tag = 'scoped memory for tpu_custom_call.1']
    #allocation9 [shape = 'u8[8192]{0}', space=vmem, size = 0x2000, scoped, tag = 'input window, operand 3, single buffered']
    #allocation10 [shape = 'u8[8192]{0}', space=vmem, size = 0x2000, scoped, tag = 'output window, operand 0']
    #allocation11 [shape = 'u8[32768]{0}', space=vmem, size = 0x8000, scoped, tag = 'output window, operand 1']
    #allocation12 [shape = 's32[2]{0}', space=sflag, size = 0x8, scoped, tag = 'scoped memory for tpu_custom_call.1']
    %14 = vsyncpa [#allocation5], 0
    %s15 = scalar_lea.sflag [#allocation5], 1
    %16 = vsyncpa %s15, 0
    %17 = vsyncpa [#allocation8], 0
    %18 = vsyncpa [#allocation6], 0
    %s19 = scalar_lea.sflag [#allocation6], 1
    %20 = vsyncpa %s19, 0
    %21 = vsyncpa [#allocation12], 0
    %s22 = scalar_lea.sflag [#allocation12], 1
    %23 = vsyncpa %s22, 0
    loop: start=0, step=1, limit=4
    $region2: #{tpu_custom_call.1} parent=1 // loop_pre_header
      _
    $region3: #{tpu_custom_call.1} parent=1 // loop_header
      %s25 = sphi 0, %s29
      %p26 = scmp.ge.s32.totalorder %s25, 4
      %s32 = sphi 0, %s44
      %s33 = sphi 0, %s40
      %s34 = sphi 0, %s32
      %s35 = sphi 0, %s33
      %s36 = sphi 0, %s34
      %s37 = sphi 0, %s35
      %s47 = sphi 0, %s49
      %s50 = sphi 0, %s47
      %s51 = sphi 0, %s50
      %s67 = sphi 0, %s51
      %s71 = sphi 0, %s71
      %s73 = sphi 0, %s71
      %s74 = sphi 0, %s73
      %s88 = sphi 0, %s74
      %s92 = sphi 0, %s92
      %s94 = sphi 0, %s92
      %s95 = sphi 0, %s94
      %s109 = sphi 0, %s95
      %s113 = sphi 0, %s113
      %s115 = sphi 0, %s113
      %s116 = sphi 0, %s115
      %s130 = sphi 0, %s116
      %s134 = sphi 0, %s134
      %s136 = sphi 0, %s134
      %s137 = sphi 0, %s136
      %s151 = sphi 0, %s137
      %s155 = sphi 0, %s155
      %s157 = sphi 0, %s155
      %s158 = sphi 0, %s157
      %s172 = sphi 0, %s158
      %s176 = sphi 0, %s176
      %s178 = sphi 0, %s176
      %s179 = sphi 0, %s178
      %s193 = sphi 0, %s179
      %s201 = sphi 0, %s203
      %s204 = sphi 0, %s201
      %s205 = sphi 0, %s204
      %s221 = sphi 0, %s205
      %s229 = sphi 0, %s231
      %s232 = sphi 0, %s229
      %s233 = sphi 0, %s232
      %s249 = sphi 0, %s233
    $region4: #{tpu_custom_call.1} parent=1 // loop_header_branch
      %28 = sbr.rel (%p26) target = $region8
    $region5: #{tpu_custom_call.1} parent=1 // loop_body
      %s30 = ssub.s32 %s25, 1
      %s31 = ssub.s32 %s25, 2
      %s38 = sadd.s32 1, %s33
      %p39 = scmp.ge.s32.totalorder %s38, 1
      %s40 = scalar_select %p39, 0, %s38
      %s41 = sadd.s32 1, %s32
      %s42 = scalar_select %p39, %s41, %s32
      %p43 = scmp.ge.s32.totalorder %s42, 2
      %s44 = scalar_select %p43, 0, %s42
      %s45 = ssub.s32 %s32, %s44
      %p46 = scmp.eq.s32.totalorder %s45, 0
      %s48 = sadd.s32 %s47, 1
      %s49 = scalar_select %p46, %s47, %s48
      %p52 = pneg %p46
      %p53 = scmp.eq.s32.totalorder %s25, 1
      %p54 = por %p52, %p53
      %p55 = scmp.ne.s32.totalorder %s47, %s50
      %p56 = scmp.eq.s32.totalorder %s25, 0
      %p57 = por %p55, %p56
      %p58 = scmp.ne.s32.totalorder %s47, %s50
      %p59 = scmp.eq.s32.totalorder %s30, 1
      %p60 = por %p58, %p59
      %p61 = scmp.ne.s32.totalorder %s50, %s51
      %p62 = scmp.eq.s32.totalorder %s30, 0
      %p63 = por %p61, %p62
      %p64 = scmp.ne.s32.totalorder %s50, %s51
      %p65 = scmp.eq.s32.totalorder %s31, 1
      %p66 = por %p64, %p65
      %p68 = scmp.ne.s32.totalorder %s51, %s67
      %p69 = scmp.eq.s32.totalorder %s31, 0
      %p70 = por %p68, %p69
      %s72 = sadd.s32 %s71, 1
      %p75 = scmp.eq.s32.totalorder %s25, 1
      %p76 = scmp.ne.s32.totalorder %s71, %s73
      %p77 = scmp.eq.s32.totalorder %s25, 0
      %p78 = por %p76, %p77
      %p79 = scmp.ne.s32.totalorder %s71, %s73
      %p80 = scmp.eq.s32.totalorder %s30, 1
      %p81 = por %p79, %p80
      %p82 = scmp.ne.s32.totalorder %s73, %s74
      %p83 = scmp.eq.s32.totalorder %s30, 0
      %p84 = por %p82, %p83
      %p85 = scmp.ne.s32.totalorder %s73, %s74
      %p86 = scmp.eq.s32.totalorder %s31, 1
      %p87 = por %p85, %p86
      %p89 = scmp.ne.s32.totalorder %s74, %s88
      %p90 = scmp.eq.s32.totalorder %s31, 0
      %p91 = por %p89, %p90
      %s93 = sadd.s32 %s92, 1
      %p96 = scmp.eq.s32.totalorder %s25, 1
      %p97 = scmp.ne.s32.totalorder %s92, %s94
      %p98 = scmp.eq.s32.totalorder %s25, 0
      %p99 = por %p97, %p98
      %p100 = scmp.ne.s32.totalorder %s92, %s94
      %p101 = scmp.eq.s32.totalorder %s30, 1
      %p102 = por %p100, %p101
      %p103 = scmp.ne.s32.totalorder %s94, %s95
      %p104 = scmp.eq.s32.totalorder %s30, 0
      %p105 = por %p103, %p104
      %p106 = scmp.ne.s32.totalorder %s94, %s95
      %p107 = scmp.eq.s32.totalorder %s31, 1
      %p108 = por %p106, %p107
      %p110 = scmp.ne.s32.totalorder %s95, %s109
      %p111 = scmp.eq.s32.totalorder %s31, 0
      %p112 = por %p110, %p111
      %s114 = sadd.s32 %s113, 1
      %p117 = scmp.eq.s32.totalorder %s25, 1
      %p118 = scmp.ne.s32.totalorder %s113, %s115
      %p119 = scmp.eq.s32.totalorder %s25, 0
      %p120 = por %p118, %p119
      %p121 = scmp.ne.s32.totalorder %s113, %s115
      %p122 = scmp.eq.s32.totalorder %s30, 1
      %p123 = por %p121, %p122
      %p124 = scmp.ne.s32.totalorder %s115, %s116
      %p125 = scmp.eq.s32.totalorder %s30, 0
      %p126 = por %p124, %p125
      %p127 = scmp.ne.s32.totalorder %s115, %s116
      %p128 = scmp.eq.s32.totalorder %s31, 1
      %p129 = por %p127, %p128
      %p131 = scmp.ne.s32.totalorder %s116, %s130
      %p132 = scmp.eq.s32.totalorder %s31, 0
      %p133 = por %p131, %p132
      %s135 = sadd.s32 %s134, 1
      %p138 = scmp.eq.s32.totalorder %s25, 1
      %p139 = scmp.ne.s32.totalorder %s134, %s136
      %p140 = scmp.eq.s32.totalorder %s25, 0
      %p141 = por %p139, %p140
      %p142 = scmp.ne.s32.totalorder %s134, %s136
      %p143 = scmp.eq.s32.totalorder %s30, 1
      %p144 = por %p142, %p143
      %p145 = scmp.ne.s32.totalorder %s136, %s137
      %p146 = scmp.eq.s32.totalorder %s30, 0
      %p147 = por %p145, %p146
      %p148 = scmp.ne.s32.totalorder %s136, %s137
      %p149 = scmp.eq.s32.totalorder %s31, 1
      %p150 = por %p148, %p149
      %p152 = scmp.ne.s32.totalorder %s137, %s151
      %p153 = scmp.eq.s32.totalorder %s31, 0
      %p154 = por %p152, %p153
      %s156 = sadd.s32 %s155, 1
      %p159 = scmp.eq.s32.totalorder %s25, 1
      %p160 = scmp.ne.s32.totalorder %s155, %s157
      %p161 = scmp.eq.s32.totalorder %s25, 0
      %p162 = por %p160, %p161
      %p163 = scmp.ne.s32.totalorder %s155, %s157
      %p164 = scmp.eq.s32.totalorder %s30, 1
      %p165 = por %p163, %p164
      %p166 = scmp.ne.s32.totalorder %s157, %s158
      %p167 = scmp.eq.s32.totalorder %s30, 0
      %p168 = por %p166, %p167
      %p169 = scmp.ne.s32.totalorder %s157, %s158
      %p170 = scmp.eq.s32.totalorder %s31, 1
      %p171 = por %p169, %p170
      %p173 = scmp.ne.s32.totalorder %s158, %s172
      %p174 = scmp.eq.s32.totalorder %s31, 0
      %p175 = por %p173, %p174
      %s177 = sadd.s32 %s176, 1
      %p180 = scmp.eq.s32.totalorder %s25, 1
      %p181 = scmp.ne.s32.totalorder %s176, %s178
      %p182 = scmp.eq.s32.totalorder %s25, 0
      %p183 = por %p181, %p182
      %p184 = scmp.ne.s32.totalorder %s176, %s178
      %p185 = scmp.eq.s32.totalorder %s30, 1
      %p186 = por %p184, %p185
      %p187 = scmp.ne.s32.totalorder %s178, %s179
      %p188 = scmp.eq.s32.totalorder %s30, 0
      %p189 = por %p187, %p188
      %p190 = scmp.ne.s32.totalorder %s178, %s179
      %p191 = scmp.eq.s32.totalorder %s31, 1
      %p192 = por %p190, %p191
      %p194 = scmp.ne.s32.totalorder %s179, %s193
      %p195 = scmp.eq.s32.totalorder %s31, 0
      %p196 = por %p194, %p195
      %s197 = ssub.s32 %s32, %s44
      %s198 = ssub.s32 %s33, %s40
      %s199 = sor.u32 %s197, %s198
      %p200 = scmp.eq.s32.totalorder %s199, 0
      %s202 = sadd.s32 %s201, 1
      %s203 = scalar_select %p200, %s201, %s202
      %p206 = pneg %p200
      %p207 = scmp.eq.s32.totalorder %s25, 1
      %p208 = por %p206, %p207
      %p209 = scmp.ne.s32.totalorder %s201, %s204
      %p210 = scmp.eq.s32.totalorder %s25, 0
      %p211 = por %p209, %p210
      %p212 = scmp.ne.s32.totalorder %s201, %s204
      %p213 = scmp.eq.s32.totalorder %s30, 1
      %p214 = por %p212, %p213
      %p215 = scmp.ne.s32.totalorder %s204, %s205
      %p216 = scmp.eq.s32.totalorder %s30, 0
      %p217 = por %p215, %p216
      %p218 = scmp.ne.s32.totalorder %s204, %s205
      %p219 = scmp.eq.s32.totalorder %s31, 1
      %p220 = por %p218, %p219
      %p222 = scmp.ne.s32.totalorder %s205, %s221
      %p223 = scmp.eq.s32.totalorder %s31, 0
      %p224 = por %p222, %p223
      %s225 = ssub.s32 %s32, %s44
      %s226 = ssub.s32 %s33, %s40
      %s227 = sor.u32 %s225, %s226
      %p228 = scmp.eq.s32.totalorder %s227, 0
      %s230 = sadd.s32 %s229, 1
      %s231 = scalar_select %p228, %s229, %s230
      %p234 = pneg %p228
      %p235 = scmp.eq.s32.totalorder %s25, 1
      %p236 = por %p234, %p235
      %p237 = scmp.ne.s32.totalorder %s229, %s232
      %p238 = scmp.eq.s32.totalorder %s25, 0
      %p239 = por %p237, %p238
      %p240 = scmp.ne.s32.totalorder %s229, %s232
      %p241 = scmp.eq.s32.totalorder %s30, 1
      %p242 = por %p240, %p241
      %p243 = scmp.ne.s32.totalorder %s232, %s233
      %p244 = scmp.eq.s32.totalorder %s30, 0
      %p245 = por %p243, %p244
      %p246 = scmp.ne.s32.totalorder %s232, %s233
      %p247 = scmp.eq.s32.totalorder %s31, 1
      %p248 = por %p246, %p247
      %p250 = scmp.ne.s32.totalorder %s233, %s249
      %p251 = scmp.eq.s32.totalorder %s31, 0
      %p252 = por %p250, %p251
      %p253 = scmp.le.s32.totalorder 1, %s25
      %p254 = scmp.lt.s32.totalorder %s25, 3
      %p255 = pnand %p253, %p254
      %p256 = pneg %p255
      // Predicated region
      $region9: #{tpu_custom_call.1} parent=5 // pred_check
        _
      $region10: #{tpu_custom_call.1} parent=5 // pred_check_branch
        %258 = sbr.rel (%p255) target = $region12
      $region11: #{tpu_custom_call.1} parent=5 // pred_region
        %s259 = ssub.s32 %s25, 1
        // Predicated region
        $region13: #{tpu_custom_call.1} parent=11 // pred_check
          %p260 = pneg %p84
        $region14: #{tpu_custom_call.1} parent=11 // pred_check_branch
          %262 = sbr.rel (%p260) target = $region16
        $region15: #{tpu_custom_call.1} parent=11 // pred_region
          %s264 = ssub.s32 256, 256
          %265 = vsyncadd [#allocation8], %s264
          %s266 = sshll.u32 [#allocation7], 4
          %s267 = int_to_ptr.vmem [resolvable:$true] %s266
          %272 = dma.hbm_to_vmem [thread:$0]  %s1, 256, %s267, [#allocation8], 64, 64, 4
        $region16: #{tpu_custom_call.1} parent=11 // pred_fallthru
          _
        // Predicated region
        $region17: #{tpu_custom_call.1} parent=11 // pred_check
          %p273 = pneg %p105
        $region18: #{tpu_custom_call.1} parent=11 // pred_check_branch
          %275 = sbr.rel (%p273) target = $region20
        $region19: #{tpu_custom_call.1} parent=11 // pred_region
          _
        $region20: #{tpu_custom_call.1} parent=11 // pred_fallthru
          _
        // Predicated region
        $region21: #{tpu_custom_call.1} parent=11 // pred_check
          %p276 = pneg %p126
        $region22: #{tpu_custom_call.1} parent=11 // pred_check_branch
          %278 = sbr.rel (%p276) target = $region24
        $region23: #{tpu_custom_call.1} parent=11 // pred_region
          %s280 = ssub.s32 256, 256
          %281 = vsyncadd [#allocation8], %s280
          %s282 = sshll.u32 [#allocation9], 4
          %s283 = int_to_ptr.vmem [resolvable:$true] %s282
          %288 = dma.hbm_to_vmem [thread:$0]  %s3, 256, %s283, [#allocation8], 64, 64, 4
        $region24: #{tpu_custom_call.1} parent=11 // pred_fallthru
          _
        // Predicated region
        $region25: #{tpu_custom_call.1} parent=11 // pred_check
          %p289 = pneg %p147
        $region26: #{tpu_custom_call.1} parent=11 // pred_check_branch
          %291 = sbr.rel (%p289) target = $region28
        $region27: #{tpu_custom_call.1} parent=11 // pred_region
          _
        $region28: #{tpu_custom_call.1} parent=11 // pred_fallthru
          _
        // Predicated region
        $region29: #{tpu_custom_call.1} parent=11 // pred_check
          %p292 = pneg %p168
        $region30: #{tpu_custom_call.1} parent=11 // pred_check_branch
          %294 = sbr.rel (%p292) target = $region32
        $region31: #{tpu_custom_call.1} parent=11 // pred_region
          _
        $region32: #{tpu_custom_call.1} parent=11 // pred_fallthru
          _
        // Predicated region
        $region33: #{tpu_custom_call.1} parent=11 // pred_check
          %p295 = pneg %p189
        $region34: #{tpu_custom_call.1} parent=11 // pred_check_branch
          %297 = sbr.rel (%p295) target = $region36
        $region35: #{tpu_custom_call.1} parent=11 // pred_region
          _
        $region36: #{tpu_custom_call.1} parent=11 // pred_fallthru
          _
      $region12: #{tpu_custom_call.1} parent=5 // pred_fallthru
        _
      %p298 = scmp.lt.s32.totalorder %s25, 2
      // Predicated region
      $region37: #{tpu_custom_call.1} parent=5 // pred_check
        %p299 = pneg %p298
      $region38: #{tpu_custom_call.1} parent=5 // pred_check_branch
        %301 = sbr.rel (%p299) target = $region40
      $region39: #{tpu_custom_call.1} parent=5 // pred_region
        // Predicated region
        $region41: #{tpu_custom_call.1} parent=39 // pred_check
          %p302 = pneg %p57
        $region42: #{tpu_custom_call.1} parent=39 // pred_check_branch
          %304 = sbr.rel (%p302) target = $region44
        $region43: #{tpu_custom_call.1} parent=39 // pred_region
          %s305 = sand.u32 %s47, 1
          %s306 = scalar_lea.sflag [#allocation5], %s305
          %s307 = sand.u32 %s47, 1
          %s308 = smul.addr %s307, 4
          %s309 = scalar_lea.vmem [#allocation4], %s308
          %s311 = ssub.s32 64, 64
          %312 = vsyncadd %s306, %s311
          %s313 = smul.addr %s32, 64
          %s314 = scalar_lea.hbm %s0, %s313
          %s316 = sshll.u32 %s309, 4
          %s317 = int_to_ptr.vmem [resolvable:$true] %s316
          %319 = dma.hbm_to_vmem [thread:$0]  %s314, 64, %s317, %s306
        $region44: #{tpu_custom_call.1} parent=39 // pred_fallthru
          _
      $region40: #{tpu_custom_call.1} parent=5 // pred_fallthru
        _
      %p320 = scmp.le.s32.totalorder 1, %s25
      %p321 = scmp.lt.s32.totalorder %s25, 3
      %p322 = pnand %p320, %p321
      %p323 = pneg %p322
      // Predicated region
      $region45: #{tpu_custom_call.1} parent=5 // pred_check
        _
      $region46: #{tpu_custom_call.1} parent=5 // pred_check_branch
        %325 = sbr.rel (%p322) target = $region48
      $region47: #{tpu_custom_call.1} parent=5 // pred_region
        %s326 = ssub.s32 %s25, 1
        %s327 = sand.u32 %s50, 1
        %s328 = scalar_lea.sflag [#allocation5], %s327
        %s329 = sand.u32 %s50, 1
        %s330 = smul.addr %s329, 4
        %s331 = scalar_lea.vmem [#allocation4], %s330
        // Predicated region
        $region49: #{tpu_custom_call.1} parent=47 // pred_check
          %p332 = pneg %p63
        $region50: #{tpu_custom_call.1} parent=47 // pred_check_branch
          %334 = sbr.rel (%p332) target = $region52
        $region51: #{tpu_custom_call.1} parent=47 // pred_region
          %335 = dma.done %s328, 64
        $region52: #{tpu_custom_call.1} parent=47 // pred_fallthru
          _
        // Predicated region
        $region53: #{tpu_custom_call.1} parent=47 // pred_check
          %p336 = pneg %p84
        $region54: #{tpu_custom_call.1} parent=47 // pred_check_branch
          %338 = sbr.rel (%p336) target = $region56
        $region55: #{tpu_custom_call.1} parent=47 // pred_region
          %339 = dma.done [#allocation8], 256
        $region56: #{tpu_custom_call.1} parent=47 // pred_fallthru
          _
        // Predicated region
        $region57: #{tpu_custom_call.1} parent=47 // pred_check
          %p340 = pneg %p126
        $region58: #{tpu_custom_call.1} parent=47 // pred_check_branch
          %342 = sbr.rel (%p340) target = $region60
        $region59: #{tpu_custom_call.1} parent=47 // pred_region
          %343 = dma.done [#allocation8], 256
        $region60: #{tpu_custom_call.1} parent=47 // pred_fallthru
          _
        %s344 = sand.u32 %s50, 1
        %s345 = scalar_lea.sflag [#allocation5], %s344
        %s346 = sand.u32 %s50, 1
        %s347 = smul.addr %s346, 4
        %s348 = scalar_lea.vmem [#allocation4], %s347
        %p349 = pneg %p63
        %p350 = pneg %p60
        %p351 = pneg %p84
        %p352 = pneg %p81
        %p353 = pneg %p105
        %p354 = pneg %p102
        %p355 = pneg %p126
        %p356 = pneg %p123
        %p357 = pneg %p147
        %p358 = pneg %p144
        %p359 = pneg %p168
        %p360 = pneg %p165
        %p361 = pneg %p189
        %p362 = pneg %p186
        %p363 = pneg %p217
        %p364 = pneg %p214
        %s365 = sand.u32 %s204, 1
        %s366 = scalar_lea.sflag [#allocation6], %s365
        %s367 = sand.u32 %s204, 1
        %s368 = smul.addr %s367, 8
        %s369 = scalar_lea.vmem [#allocation10], %s368
        %p370 = pneg %p245
        %p371 = pneg %p242
        %s372 = sand.u32 %s232, 1
        %s373 = scalar_lea.sflag [#allocation12], %s372
        %s374 = sand.u32 %s232, 1
        %s375 = smul.addr %s374, 32
        %s376 = scalar_lea.vmem [#allocation11], %s375
        %p378 = scmp.eq.s32.totalorder %s35, 0
        // Predicated region
        $region61: #{tpu_custom_call.1} parent=47 // pred_check
          %p379 = pneg %p378
        $region62: #{tpu_custom_call.1} parent=47 // pred_check_branch
          %381 = sbr.rel (%p379) target = $region64
        $region63: #{tpu_custom_call.1} parent=47 // pred_region
          %v382 = vld [vmem:[%s331] sm:$0xf]
          %v383 = vld [vmem:[#allocation9] sm:$0xf]
          %v384 = vld [vmem:[#allocation9 + $0x4] sm:$0xf]
          %v385 = vld [vmem:[#allocation9 + $0x8] sm:$0xf]
          %v386 = vld [vmem:[#allocation9 + $0xc] sm:$0xf]
          %v387 = vld [vmem:[%s4] sm:$0x1]
          %v389 = vlaneseq
          %v390 = vshrl.u32 %v389, 7
          %v391 = vsub.s32 0, %v390
          %v392 = vrot.slane %v387, %v391
          %v398 = vunpack.c.l.b16 %v383
          %v399 = vunpack.c.l.b16 %v384
          %v400 = vunpack.c.l.b16 %v385
          %v401 = vunpack.c.l.b16 %v386
          %v402 = vpack.c.b16 %v399, %v398
          %v403 = vpack.c.b16 %v401, %v400
          %vm406 = vcmask 261120
          %v408 = vsel %vm406, %v382, 0
          %410 = vmatprep.subr.bf16.mxu0 0
          %411 = vmatpush1.bf16.msra.mxu0 %v402
          %412 = vmatprep.subr.bf16.mxu0 0
          %413 = vmatpush1.bf16.msra.mxu0 %v403
          %414 = vmatprep.subr.bf16.mxu0 0
          %415 = vmatpush1.bf16.msra.mxu0 0
          %416 = vmatprep.subr.bf16.mxu0 0
          %417 = vmatpush1.bf16.msra.mxu0 0
          %418 = vmatprep.subr.bf16.mxu0 0
          %419 = vmatpush1.bf16.msra.mxu0 0
          %420 = vmatprep.subr.bf16.mxu0 0
          %421 = vmatpush1.bf16.msra.mxu0 0
          %422 = vmatprep.subr.bf16.mxu0 0
          %423 = vmatpush1.bf16.msra.mxu0 0
          %424 = vmatprep.subr.bf16.mxu0 0
          %425 = vmatpush1.bf16.msra.mxu0 0
          %426 = vmatprep.subr.bf16.mxu0 0
          %427 = vmatpush1.bf16.msra.mxu0 0
          %428 = vmatprep.subr.bf16.mxu0 0
          %429 = vmatpush1.bf16.msra.mxu0 0
          %430 = vmatprep.subr.bf16.mxu0 0
          %431 = vmatpush1.bf16.msra.mxu0 0
          %432 = vmatprep.subr.bf16.mxu0 0
          %433 = vmatpush1.bf16.msra.mxu0 0
          %434 = vmatprep.subr.bf16.mxu0 0
          %435 = vmatpush1.bf16.msra.mxu0 0
          %436 = vmatprep.subr.bf16.mxu0 0
          %437 = vmatpush1.bf16.msra.mxu0 0
          %438 = vmatprep.subr.bf16.mxu0 0
          %439 = vmatpush1.bf16.msra.mxu0 0
          %440 = vmatprep.subr.bf16.mxu0 0
          %441 = vmatpush1.bf16.msra.mxu0 0
          %442 = vmatprep.mubr.bf16.mxu0 0
          %443 = vmatmul.mubr.bf16.gmra.mrb[0].mxu0 %v408
          %v444 = vpop.f32.mrb[0].mxu0
          %v445 = vadd.f32 %v392, %v444
          %v446 = vpop.f32.mrb[0].mxu0
          %v447 = vpop.f32.mrb[0].mxu0
          %v448 = vpop.f32.mrb[0].mxu0
          %449 = vdwg.mxu0
          %v450 = vpack.c.bf16 %v445, %v445
          %vm451 = vcmask 519168
          %452 = vst.msk [vmem:[#allocation2] sm:$0xf] %vm451, %v450
        $region64: #{tpu_custom_call.1} parent=47 // pred_fallthru
          _
        %s453 = smul.u32 %s35, 8
        %s454 = sshra.s32 %s453, 3
        %s455 = sand.u32 %s453, 7
        %s456 = smul.addr %s454, 4
        %s457 = scalar_lea.vmem %s331, %s456 [#allocation4]
        %v458 = vld [vmem:[%s457] sm:$0xf]
        %v459 = vld [vmem:[#allocation7] sm:$0xf]
        %v460 = vld [vmem:[#allocation7 + $0x4] sm:$0xf]
        %v461 = vld [vmem:[#allocation7 + $0x8] sm:$0xf]
        %v462 = vld [vmem:[#allocation7 + $0xc] sm:$0xf]
        %v463 = vld [vmem:[%s2] sm:$0x1]
        %v465 = vlaneseq
        %v466 = vshrl.u32 %v465, 7
        %v467 = vsub.s32 0, %v466
        %v468 = vrot.slane %v463, %v467
        %v474 = vunpack.c.l.b16 %v459
        %v475 = vunpack.c.l.b16 %v460
        %v476 = vunpack.c.l.b16 %v461
        %v477 = vunpack.c.l.b16 %v462
        %v478 = vpack.c.b16 %v475, %v474
        %v479 = vpack.c.b16 %v477, %v476
        %vm482 = vcmask 261120
        %v484 = vsel %vm482, %v458, 0
        %486 = vmatprep.subr.bf16.mxu0 0
        %487 = vmatpush1.bf16.msra.mxu0 %v478
        %488 = vmatprep.subr.bf16.mxu0 0
        %489 = vmatpush1.bf16.msra.mxu0 %v479
        %490 = vmatprep.subr.bf16.mxu0 0
        %491 = vmatpush1.bf16.msra.mxu0 0
        %492 = vmatprep.subr.bf16.mxu0 0
        %493 = vmatpush1.bf16.msra.mxu0 0
        %494 = vmatprep.subr.bf16.mxu0 0
        %495 = vmatpush1.bf16.msra.mxu0 0
        %496 = vmatprep.subr.bf16.mxu0 0
        %497 = vmatpush1.bf16.msra.mxu0 0
        %498 = vmatprep.subr.bf16.mxu0 0
        %499 = vmatpush1.bf16.msra.mxu0 0
        %500 = vmatprep.subr.bf16.mxu0 0
        %501 = vmatpush1.bf16.msra.mxu0 0
        %502 = vmatprep.subr.bf16.mxu0 0
        %503 = vmatpush1.bf16.msra.mxu0 0
        %504 = vmatprep.subr.bf16.mxu0 0
        %505 = vmatpush1.bf16.msra.mxu0 0
        %506 = vmatprep.subr.bf16.mxu0 0
        %507 = vmatpush1.bf16.msra.mxu0 0
        %508 = vmatprep.subr.bf16.mxu0 0
        %509 = vmatpush1.bf16.msra.mxu0 0
        %510 = vmatprep.subr.bf16.mxu0 0
        %511 = vmatpush1.bf16.msra.mxu0 0
        %512 = vmatprep.subr.bf16.mxu0 0
        %513 = vmatpush1.bf16.msra.mxu0 0
        %514 = vmatprep.subr.bf16.mxu0 0
        %515 = vmatpush1.bf16.msra.mxu0 0
        %516 = vmatprep.subr.bf16.mxu0 0
        %517 = vmatpush1.bf16.msra.mxu0 0
        %518 = vmatprep.mubr.bf16.mxu0 0
        %519 = vmatmul.mubr.bf16.gmra.mrb[0].mxu0 %v484
        %v520 = vpop.f32.mrb[0].mxu0
        %v521 = vadd.f32 %v468, %v520
        %v522 = vpop.f32.mrb[0].mxu0
        %v523 = vpop.f32.mrb[0].mxu0
        %v524 = vpop.f32.mrb[0].mxu0
        %525 = vdwg.mxu0
        %v526 = vpack.c.bf16 %v521, %v521
        %v527 = vld [vmem:[#allocation2] sm:$0xf]
        %vm528 = vcmask 64512
        %v530 = vsel %vm528, %v526, 0
        %v533 = vsel %vm528, %v527, 0
        %535 = vmatprep.subr.bf16.mxu0 0
        %536 = vmatpush1.bf16.xpose.msra.mxu0 %v533
        %537 = vmatprep.subr.bf16.mxu0 0
        %538 = vmatpush1.bf16.xpose.msra.mxu0 0
        %539 = vmatprep.subr.bf16.mxu0 0
        %540 = vmatpush1.bf16.xpose.msra.mxu0 0
        %541 = vmatprep.subr.bf16.mxu0 0
        %542 = vmatpush1.bf16.xpose.msra.mxu0 0
        %543 = vmatprep.subr.bf16.mxu0 0
        %544 = vmatpush1.bf16.xpose.msra.mxu0 0
        %545 = vmatprep.subr.bf16.mxu0 0
        %546 = vmatpush1.bf16.xpose.msra.mxu0 0
        %547 = vmatprep.subr.bf16.mxu0 0
        %548 = vmatpush1.bf16.xpose.msra.mxu0 0
        %549 = vmatprep.subr.bf16.mxu0 0
        %550 = vmatpush1.bf16.xpose.msra.mxu0 0
        %551 = vmatprep.subr.bf16.mxu0 0
        %552 = vmatpush1.bf16.xpose.msra.mxu0 0
        %553 = vmatprep.subr.bf16.mxu0 0
        %554 = vmatpush1.bf16.xpose.msra.mxu0 0
        %555 = vmatprep.subr.bf16.mxu0 0
        %556 = vmatpush1.bf16.xpose.msra.mxu0 0
        %557 = vmatprep.subr.bf16.mxu0 0
        %558 = vmatpush1.bf16.xpose.msra.mxu0 0
        %559 = vmatprep.subr.bf16.mxu0 0
        %560 = vmatpush1.bf16.xpose.msra.mxu0 0
        %561 = vmatprep.subr.bf16.mxu0 0
        %562 = vmatpush1.bf16.xpose.msra.mxu0 0
        %563 = vmatprep.subr.bf16.mxu0 0
        %564 = vmatpush1.bf16.xpose.msra.mxu0 0
        %565 = vmatprep.subr.bf16.mxu0 0
        %566 = vmatpush1.bf16.xpose.msra.mxu0 0
        %567 = vmatprep.mubr.bf16.mxu0 0
        %568 = vmatmul.mubr.bf16.gmra.mrb[0].mxu0 %v530
        %v569 = vpop.f32.mrb[0].mxu0
        %v570 = vadd.f32 0.0, %v569
        %v571 = vpop.f32.mrb[0].mxu0
        %v572 = vpop.f32.mrb[0].mxu0
        %v573 = vpop.f32.mrb[0].mxu0
        %574 = vdwg.mxu0
        %v575 = vsel %vm528, %v570, -inf
        %576 = vmax.xlane.f32.xlu0 %v575
        %v577 = vpop.xlane.xlu0 %576
        %v578 = vsub.f32 %v570, %v577
        %v579 = vmul.f32 %v578, 1.442695
        %v580 = vpow.pop %v579
        %v581 = vsel %vm528, %v580, 0.0
        %582 = vadd.xlane.f32.xlu0 %v581
        %v583 = vpop.xlane.xlu0 %582
        %v584 = vrcp.pop %v583
        %v585 = vmul.f32 %v580, %v584
        %586 = vst.msk [vmem:[%s376] sm:$0xff] %vm528, %v585
        %v587 = vpack.c.bf16 %v585, %v585
        %v589 = vunpack.c.l.b16 %v527
        %v590 = vpack.c.b16 %v589, %v589
        %591 = vrot.lane.b32.xlu0 %v590, 96
        %v592 = vpop.permute.xlu0 %591
        %v594 = vsel %vm528, %v587, 0
        %vm596 = vcmask 1043456
        %v598 = vsel %vm596, %v592, 0
        %600 = vmatprep.subr.bf16.mxu0 0
        %601 = vmatpush1.bf16.msra.mxu0 %v598
        %602 = vmatprep.subr.bf16.mxu0 0
        %603 = vmatpush1.bf16.msra.mxu0 0
        %604 = vmatprep.subr.bf16.mxu0 0
        %605 = vmatpush1.bf16.msra.mxu0 0
        %606 = vmatprep.subr.bf16.mxu0 0
        %607 = vmatpush1.bf16.msra.mxu0 0
        %608 = vmatprep.subr.bf16.mxu0 0
        %609 = vmatpush1.bf16.msra.mxu0 0
        %610 = vmatprep.subr.bf16.mxu0 0
        %611 = vmatpush1.bf16.msra.mxu0 0
        %612 = vmatprep.subr.bf16.mxu0 0
        %613 = vmatpush1.bf16.msra.mxu0 0
        %614 = vmatprep.subr.bf16.mxu0 0
        %615 = vmatpush1.bf16.msra.mxu0 0
        %616 = vmatprep.subr.bf16.mxu0 0
        %617 = vmatpush1.bf16.msra.mxu0 0
        %618 = vmatprep.subr.bf16.mxu0 0
        %619 = vmatpush1.bf16.msra.mxu0 0
        %620 = vmatprep.subr.bf16.mxu0 0
        %621 = vmatpush1.bf16.msra.mxu0 0
        %622 = vmatprep.subr.bf16.mxu0 0
        %623 = vmatpush1.bf16.msra.mxu0 0
        %624 = vmatprep.subr.bf16.mxu0 0
        %625 = vmatpush1.bf16.msra.mxu0 0
        %626 = vmatprep.subr.bf16.mxu0 0
        %627 = vmatpush1.bf16.msra.mxu0 0
        %628 = vmatprep.subr.bf16.mxu0 0
        %629 = vmatpush1.bf16.msra.mxu0 0
        %630 = vmatprep.subr.bf16.mxu0 0
        %631 = vmatpush1.bf16.msra.mxu0 0
        %632 = vmatprep.mubr.bf16.mxu0 0
        %633 = vmatmul.mubr.bf16.gmra.mrb[0].mxu0 %v594
        %v634 = vpop.f32.mrb[0].mxu0
        %v635 = vadd.f32 0.0, %v634
        %v636 = vpop.f32.mrb[0].mxu0
        %v637 = vpop.f32.mrb[0].mxu0
        %v638 = vpop.f32.mrb[0].mxu0
        %639 = vdwg.mxu0
        %v640 = vpack.c.bf16 %v635, %v635
        %vm641 = vcmask 60416
        %642 = vst.msk [vmem:[#allocation3] sm:$0xf] %vm641, %v640
        %v643 = vld [vmem:[#allocation2] sm:$0xf]
        %645 = vrot.lane.b32.xlu0 %v526, 120
        %v646 = vpop.permute.xlu0 %645
        %v648 = vunpack.c.l.b16 %v643
        %v649 = vpack.c.b16 %v648, %v648
        %650 = vrot.lane.b32.xlu0 %v649, 120
        %v651 = vpop.permute.xlu0 %650
        %v653 = vsel %vm528, %v646, 0
        %v656 = vsel %vm528, %v651, 0
        %658 = vmatprep.subr.bf16.mxu0 0
        %659 = vmatpush1.bf16.xpose.msra.mxu0 %v656
        %660 = vmatprep.subr.bf16.mxu0 0
        %661 = vmatpush1.bf16.xpose.msra.mxu0 0
        %662 = vmatprep.subr.bf16.mxu0 0
        %663 = vmatpush1.bf16.xpose.msra.mxu0 0
        %664 = vmatprep.subr.bf16.mxu0 0
        %665 = vmatpush1.bf16.xpose.msra.mxu0 0
        %666 = vmatprep.subr.bf16.mxu0 0
        %667 = vmatpush1.bf16.xpose.msra.mxu0 0
        %668 = vmatprep.subr.bf16.mxu0 0
        %669 = vmatpush1.bf16.xpose.msra.mxu0 0
        %670 = vmatprep.subr.bf16.mxu0 0
        %671 = vmatpush1.bf16.xpose.msra.mxu0 0
        %672 = vmatprep.subr.bf16.mxu0 0
        %673 = vmatpush1.bf16.xpose.msra.mxu0 0
        %674 = vmatprep.subr.bf16.mxu0 0
        %675 = vmatpush1.bf16.xpose.msra.mxu0 0
        %676 = vmatprep.subr.bf16.mxu0 0
        %677 = vmatpush1.bf16.xpose.msra.mxu0 0
        %678 = vmatprep.subr.bf16.mxu0 0
        %679 = vmatpush1.bf16.xpose.msra.mxu0 0
        %680 = vmatprep.subr.bf16.mxu0 0
        %681 = vmatpush1.bf16.xpose.msra.mxu0 0
        %682 = vmatprep.subr.bf16.mxu0 0
        %683 = vmatpush1.bf16.xpose.msra.mxu0 0
        %684 = vmatprep.subr.bf16.mxu0 0
        %685 = vmatpush1.bf16.xpose.msra.mxu0 0
        %686 = vmatprep.subr.bf16.mxu0 0
        %687 = vmatpush1.bf16.xpose.msra.mxu0 0
        %688 = vmatprep.subr.bf16.mxu0 0
        %689 = vmatpush1.bf16.xpose.msra.mxu0 0
        %690 = vmatprep.mubr.bf16.mxu0 0
        %691 = vmatmul.mubr.bf16.gmra.mrb[0].mxu0 %v653
        %v692 = vpop.f32.mrb[0].mxu0
        %v693 = vadd.f32 0.0, %v692
        %v694 = vpop.f32.mrb[0].mxu0
        %v695 = vpop.f32.mrb[0].mxu0
        %v696 = vpop.f32.mrb[0].mxu0
        %697 = vdwg.mxu0
        %v698 = vsel %vm528, %v693, -inf
        %699 = vmax.xlane.f32.xlu0 %v698
        %v700 = vpop.xlane.xlu0 %699
        %v701 = vsub.f32 %v693, %v700
        %v702 = vmul.f32 %v701, 1.442695
        %v703 = vpow.pop %v702
        %v704 = vsel %vm528, %v703, 0.0
        %705 = vadd.xlane.f32.xlu0 %v704
        %v706 = vpop.xlane.xlu0 %705
        %v707 = vrcp.pop %v706
        %v708 = vmul.f32 %v703, %v707
        %s709 = scalar_lea.vmem %s376, 8 [#allocation11]
        %710 = vst.msk [vmem:[%s709] sm:$0xff] %vm528, %v708
        %v711 = vpack.c.bf16 %v708, %v708
        %712 = vrot.lane.b32.xlu0 %v649, 88
        %v713 = vpop.permute.xlu0 %712
        %v715 = vsel %vm528, %v711, 0
        %v718 = vsel %vm596, %v713, 0
        %720 = vmatprep.subr.bf16.mxu0 0
        %721 = vmatpush1.bf16.msra.mxu0 %v718
        %722 = vmatprep.subr.bf16.mxu0 0
        %723 = vmatpush1.bf16.msra.mxu0 0
        %724 = vmatprep.subr.bf16.mxu0 0
        %725 = vmatpush1.bf16.msra.mxu0 0
        %726 = vmatprep.subr.bf16.mxu0 0
        %727 = vmatpush1.bf16.msra.mxu0 0
        %728 = vmatprep.subr.bf16.mxu0 0
        %729 = vmatpush1.bf16.msra.mxu0 0
        %730 = vmatprep.subr.bf16.mxu0 0
        %731 = vmatpush1.bf16.msra.mxu0 0
        %732 = vmatprep.subr.bf16.mxu0 0
        %733 = vmatpush1.bf16.msra.mxu0 0
        %734 = vmatprep.subr.bf16.mxu0 0
        %735 = vmatpush1.bf16.msra.mxu0 0
        %736 = vmatprep.subr.bf16.mxu0 0
        %737 = vmatpush1.bf16.msra.mxu0 0
        %738 = vmatprep.subr.bf16.mxu0 0
        %739 = vmatpush1.bf16.msra.mxu0 0
        %740 = vmatprep.subr.bf16.mxu0 0
        %741 = vmatpush1.bf16.msra.mxu0 0
        %742 = vmatprep.subr.bf16.mxu0 0
        %743 = vmatpush1.bf16.msra.mxu0 0
        %744 = vmatprep.subr.bf16.mxu0 0
        %745 = vmatpush1.bf16.msra.mxu0 0
        %746 = vmatprep.subr.bf16.mxu0 0
        %747 = vmatpush1.bf16.msra.mxu0 0
        %748 = vmatprep.subr.bf16.mxu0 0
        %749 = vmatpush1.bf16.msra.mxu0 0
        %750 = vmatprep.subr.bf16.mxu0 0
        %751 = vmatpush1.bf16.msra.mxu0 0
        %752 = vmatprep.mubr.bf16.mxu0 0
        %753 = vmatmul.mubr.bf16.gmra.mrb[0].mxu0 %v715
        %v754 = vpop.f32.mrb[0].mxu0
        %v755 = vadd.f32 0.0, %v754
        %v756 = vpop.f32.mrb[0].mxu0
        %v757 = vpop.f32.mrb[0].mxu0
        %v758 = vpop.f32.mrb[0].mxu0
        %759 = vdwg.mxu0
        %v760 = vpack.c.bf16 %v755, %v755
        %v762 = vunpack.c.l.b16 %v760
        %v763 = vpack.c.b16 %v762, %v762
        %764 = vrot.lane.b32.xlu0 %v763, 8
        %v765 = vpop.permute.xlu0 %764
        %vm767 = vcmask 126016
        %768 = vst.msk [vmem:[#allocation3] sm:$0xf] %vm767, %v765
        %v769 = vld [vmem:[#allocation2] sm:$0xf]
        %770 = vrot.lane.b32.xlu0 %v526, 112
        %v771 = vpop.permute.xlu0 %770
        %v773 = vunpack.c.l.b16 %v769
        %v774 = vpack.c.b16 %v773, %v773
        %775 = vrot.lane.b32.xlu0 %v774, 112
        %v776 = vpop.permute.xlu0 %775
        %v778 = vsel %vm528, %v771, 0
        %v781 = vsel %vm528, %v776, 0
        %783 = vmatprep.subr.bf16.mxu0 0
        %784 = vmatpush1.bf16.xpose.msra.mxu0 %v781
        %785 = vmatprep.subr.bf16.mxu0 0
        %786 = vmatpush1.bf16.xpose.msra.mxu0 0
        %787 = vmatprep.subr.bf16.mxu0 0
        %788 = vmatpush1.bf16.xpose.msra.mxu0 0
        %789 = vmatprep.subr.bf16.mxu0 0
        %790 = vmatpush1.bf16.xpose.msra.mxu0 0
        %791 = vmatprep.subr.bf16.mxu0 0
        %792 = vmatpush1.bf16.xpose.msra.mxu0 0
        %793 = vmatprep.subr.bf16.mxu0 0
        %794 = vmatpush1.bf16.xpose.msra.mxu0 0
        %795 = vmatprep.subr.bf16.mxu0 0
        %796 = vmatpush1.bf16.xpose.msra.mxu0 0
        %797 = vmatprep.subr.bf16.mxu0 0
        %798 = vmatpush1.bf16.xpose.msra.mxu0 0
        %799 = vmatprep.subr.bf16.mxu0 0
        %800 = vmatpush1.bf16.xpose.msra.mxu0 0
        %801 = vmatprep.subr.bf16.mxu0 0
        %802 = vmatpush1.bf16.xpose.msra.mxu0 0
        %803 = vmatprep.subr.bf16.mxu0 0
        %804 = vmatpush1.bf16.xpose.msra.mxu0 0
        %805 = vmatprep.subr.bf16.mxu0 0
        %806 = vmatpush1.bf16.xpose.msra.mxu0 0
        %807 = vmatprep.subr.bf16.mxu0 0
        %808 = vmatpush1.bf16.xpose.msra.mxu0 0
        %809 = vmatprep.subr.bf16.mxu0 0
        %810 = vmatpush1.bf16.xpose.msra.mxu0 0
        %811 = vmatprep.subr.bf16.mxu0 0
        %812 = vmatpush1.bf16.xpose.msra.mxu0 0
        %813 = vmatprep.subr.bf16.mxu0 0
        %814 = vmatpush1.bf16.xpose.msra.mxu0 0
        %815 = vmatprep.mubr.bf16.mxu0 0
        %816 = vmatmul.mubr.bf16.gmra.mrb[0].mxu0 %v778
        %v817 = vpop.f32.mrb[0].mxu0
        %v818 = vadd.f32 0.0, %v817
        %v819 = vpop.f32.mrb[0].mxu0
        %v820 = vpop.f32.mrb[0].mxu0
        %v821 = vpop.f32.mrb[0].mxu0
        %822 = vdwg.mxu0
        %v823 = vsel %vm528, %v818, -inf
        %824 = vmax.xlane.f32.xlu0 %v823
        %v825 = vpop.xlane.xlu0 %824
        %v826 = vsub.f32 %v818, %v825
        %v827 = vmul.f32 %v826, 1.442695
        %v828 = vpow.pop %v827
        %v829 = vsel %vm528, %v828, 0.0
        %830 = vadd.xlane.f32.xlu0 %v829
        %v831 = vpop.xlane.xlu0 %830
        %v832 = vrcp.pop %v831
        %v833 = vmul.f32 %v828, %v832
        %s834 = scalar_lea.vmem %s376, 16 [#allocation11]
        %835 = vst.msk [vmem:[%s834] sm:$0xff] %vm528, %v833
        %v836 = vpack.c.bf16 %v833, %v833
        %837 = vrot.lane.b32.xlu0 %v774, 80
        %v838 = vpop.permute.xlu0 %837
        %v840 = vsel %vm528, %v836, 0
        %v843 = vsel %vm596, %v838, 0
        %845 = vmatprep.subr.bf16.mxu0 0
        %846 = vmatpush1.bf16.msra.mxu0 %v843
        %847 = vmatprep.subr.bf16.mxu0 0
        %848 = vmatpush1.bf16.msra.mxu0 0
        %849 = vmatprep.subr.bf16.mxu0 0
        %850 = vmatpush1.bf16.msra.mxu0 0
        %851 = vmatprep.subr.bf16.mxu0 0
        %852 = vmatpush1.bf16.msra.mxu0 0
        %853 = vmatprep.subr.bf16.mxu0 0
        %854 = vmatpush1.bf16.msra.mxu0 0
        %855 = vmatprep.subr.bf16.mxu0 0
        %856 = vmatpush1.bf16.msra.mxu0 0
        %857 = vmatprep.subr.bf16.mxu0 0
        %858 = vmatpush1.bf16.msra.mxu0 0
        %859 = vmatprep.subr.bf16.mxu0 0
        %860 = vmatpush1.bf16.msra.mxu0 0
        %861 = vmatprep.subr.bf16.mxu0 0
        %862 = vmatpush1.bf16.msra.mxu0 0
        %863 = vmatprep.subr.bf16.mxu0 0
        %864 = vmatpush1.bf16.msra.mxu0 0
        %865 = vmatprep.subr.bf16.mxu0 0
        %866 = vmatpush1.bf16.msra.mxu0 0
        %867 = vmatprep.subr.bf16.mxu0 0
        %868 = vmatpush1.bf16.msra.mxu0 0
        %869 = vmatprep.subr.bf16.mxu0 0
        %870 = vmatpush1.bf16.msra.mxu0 0
        %871 = vmatprep.subr.bf16.mxu0 0
        %872 = vmatpush1.bf16.msra.mxu0 0
        %873 = vmatprep.subr.bf16.mxu0 0
        %874 = vmatpush1.bf16.msra.mxu0 0
        %875 = vmatprep.subr.bf16.mxu0 0
        %876 = vmatpush1.bf16.msra.mxu0 0
        %877 = vmatprep.mubr.bf16.mxu0 0
        %878 = vmatmul.mubr.bf16.gmra.mrb[0].mxu0 %v840
        %v879 = vpop.f32.mrb[0].mxu0
        %v880 = vadd.f32 0.0, %v879
        %v881 = vpop.f32.mrb[0].mxu0
        %v882 = vpop.f32.mrb[0].mxu0
        %v883 = vpop.f32.mrb[0].mxu0
        %884 = vdwg.mxu0
        %v885 = vpack.c.bf16 %v880, %v880
        %v887 = vunpack.c.l.b16 %v885
        %v888 = vpack.c.b16 %v887, %v887
        %889 = vrot.lane.b32.xlu0 %v888, 16
        %v890 = vpop.permute.xlu0 %889
        %vm892 = vcmask 191616
        %893 = vst.msk [vmem:[#allocation3] sm:$0xf] %vm892, %v890
        %v894 = vld [vmem:[#allocation2] sm:$0xf]
        %895 = vrot.lane.b32.xlu0 %v526, 104
        %v896 = vpop.permute.xlu0 %895
        %v898 = vunpack.c.l.b16 %v894
        %v899 = vpack.c.b16 %v898, %v898
        %900 = vrot.lane.b32.xlu0 %v899, 104
        %v901 = vpop.permute.xlu0 %900
        %v903 = vsel %vm528, %v896, 0
        %v906 = vsel %vm528, %v901, 0
        %908 = vmatprep.subr.bf16.mxu0 0
        %909 = vmatpush1.bf16.xpose.msra.mxu0 %v906
        %910 = vmatprep.subr.bf16.mxu0 0
        %911 = vmatpush1.bf16.xpose.msra.mxu0 0
        %912 = vmatprep.subr.bf16.mxu0 0
        %913 = vmatpush1.bf16.xpose.msra.mxu0 0
        %914 = vmatprep.subr.bf16.mxu0 0
        %915 = vmatpush1.bf16.xpose.msra.mxu0 0
        %916 = vmatprep.subr.bf16.mxu0 0
        %917 = vmatpush1.bf16.xpose.msra.mxu0 0
        %918 = vmatprep.subr.bf16.mxu0 0
        %919 = vmatpush1.bf16.xpose.msra.mxu0 0
        %920 = vmatprep.subr.bf16.mxu0 0
        %921 = vmatpush1.bf16.xpose.msra.mxu0 0
        %922 = vmatprep.subr.bf16.mxu0 0
        %923 = vmatpush1.bf16.xpose.msra.mxu0 0
        %924 = vmatprep.subr.bf16.mxu0 0
        %925 = vmatpush1.bf16.xpose.msra.mxu0 0
        %926 = vmatprep.subr.bf16.mxu0 0
        %927 = vmatpush1.bf16.xpose.msra.mxu0 0
        %928 = vmatprep.subr.bf16.mxu0 0
        %929 = vmatpush1.bf16.xpose.msra.mxu0 0
        %930 = vmatprep.subr.bf16.mxu0 0
        %931 = vmatpush1.bf16.xpose.msra.mxu0 0
        %932 = vmatprep.subr.bf16.mxu0 0
        %933 = vmatpush1.bf16.xpose.msra.mxu0 0
        %934 = vmatprep.subr.bf16.mxu0 0
        %935 = vmatpush1.bf16.xpose.msra.mxu0 0
        %936 = vmatprep.subr.bf16.mxu0 0
        %937 = vmatpush1.bf16.xpose.msra.mxu0 0
        %938 = vmatprep.subr.bf16.mxu0 0
        %939 = vmatpush1.bf16.xpose.msra.mxu0 0
        %940 = vmatprep.mubr.bf16.mxu0 0
        %941 = vmatmul.mubr.bf16.gmra.mrb[0].mxu0 %v903
        %v942 = vpop.f32.mrb[0].mxu0
        %v943 = vadd.f32 0.0, %v942
        %v944 = vpop.f32.mrb[0].mxu0
        %v945 = vpop.f32.mrb[0].mxu0
        %v946 = vpop.f32.mrb[0].mxu0
        %947 = vdwg.mxu0
        %v948 = vsel %vm528, %v943, -inf
        %949 = vmax.xlane.f32.xlu0 %v948
        %v950 = vpop.xlane.xlu0 %949
        %v951 = vsub.f32 %v943, %v950
        %v952 = vmul.f32 %v951, 1.442695
        %v953 = vpow.pop %v952
        %v954 = vsel %vm528, %v953, 0.0
        %955 = vadd.xlane.f32.xlu0 %v954
        %v956 = vpop.xlane.xlu0 %955
        %v957 = vrcp.pop %v956
        %v958 = vmul.f32 %v953, %v957
        %s959 = scalar_lea.vmem %s376, 24 [#allocation11]
        %960 = vst.msk [vmem:[%s959] sm:$0xff] %vm528, %v958
        %v961 = vpack.c.bf16 %v958, %v958
        %962 = vrot.lane.b32.xlu0 %v899, 72
        %v963 = vpop.permute.xlu0 %962
        %v965 = vsel %vm528, %v961, 0
        %v968 = vsel %vm596, %v963, 0
        %970 = vmatprep.subr.bf16.mxu0 0
        %971 = vmatpush1.bf16.msra.mxu0 %v968
        %972 = vmatprep.subr.bf16.mxu0 0
        %973 = vmatpush1.bf16.msra.mxu0 0
        %974 = vmatprep.subr.bf16.mxu0 0
        %975 = vmatpush1.bf16.msra.mxu0 0
        %976 = vmatprep.subr.bf16.mxu0 0
        %977 = vmatpush1.bf16.msra.mxu0 0
        %978 = vmatprep.subr.bf16.mxu0 0
        %979 = vmatpush1.bf16.msra.mxu0 0
        %980 = vmatprep.subr.bf16.mxu0 0
        %981 = vmatpush1.bf16.msra.mxu0 0
        %982 = vmatprep.subr.bf16.mxu0 0
        %983 = vmatpush1.bf16.msra.mxu0 0
        %984 = vmatprep.subr.bf16.mxu0 0
        %985 = vmatpush1.bf16.msra.mxu0 0
        %986 = vmatprep.subr.bf16.mxu0 0
        %987 = vmatpush1.bf16.msra.mxu0 0
        %988 = vmatprep.subr.bf16.mxu0 0
        %989 = vmatpush1.bf16.msra.mxu0 0
        %990 = vmatprep.subr.bf16.mxu0 0
        %991 = vmatpush1.bf16.msra.mxu0 0
        %992 = vmatprep.subr.bf16.mxu0 0
        %993 = vmatpush1.bf16.msra.mxu0 0
        %994 = vmatprep.subr.bf16.mxu0 0
        %995 = vmatpush1.bf16.msra.mxu0 0
        %996 = vmatprep.subr.bf16.mxu0 0
        %997 = vmatpush1.bf16.msra.mxu0 0
        %998 = vmatprep.subr.bf16.mxu0 0
        %999 = vmatpush1.bf16.msra.mxu0 0
        %1000 = vmatprep.subr.bf16.mxu0 0
        %1001 = vmatpush1.bf16.msra.mxu0 0
        %1002 = vmatprep.mubr.bf16.mxu0 0
        %1003 = vmatmul.mubr.bf16.gmra.mrb[0].mxu0 %v965
        %v1004 = vpop.f32.mrb[0].mxu0
        %v1005 = vadd.f32 0.0, %v1004
        %v1006 = vpop.f32.mrb[0].mxu0
        %v1007 = vpop.f32.mrb[0].mxu0
        %v1008 = vpop.f32.mrb[0].mxu0
        %1009 = vdwg.mxu0
        %v1010 = vpack.c.bf16 %v1005, %v1005
        %v1012 = vunpack.c.l.b16 %v1010
        %v1013 = vpack.c.b16 %v1012, %v1012
        %1014 = vrot.lane.b32.xlu0 %v1013, 24
        %v1015 = vpop.permute.xlu0 %1014
        %vm1017 = vcmask 257216
        %1018 = vst.msk [vmem:[#allocation3] sm:$0xf] %vm1017, %v1015
        %v1019 = vld [vmem:[#allocation3] sm:$0xf]
        %v1020 = vld [vmem:[%s5] sm:$0xf]
        %v1021 = vld [vmem:[%s5 + $0x4] sm:$0xf]
        %v1022 = vld [vmem:[%s5 + $0x8] sm:$0xf]
        %v1023 = vld [vmem:[%s5 + $0xc] sm:$0xf]
        %v1024 = vld [vmem:[%s6] sm:$0x1]
        %v1026 = vlaneseq
        %v1027 = vshrl.u32 %v1026, 7
        %v1028 = vsub.s32 0, %v1027
        %v1029 = vrot.slane %v1024, %v1028
        %v1035 = vunpack.c.l.b16 %v1020
        %v1036 = vunpack.c.l.b16 %v1021
        %v1037 = vunpack.c.l.b16 %v1022
        %v1038 = vunpack.c.l.b16 %v1023
        %v1039 = vpack.c.b16 %v1036, %v1035
        %v1040 = vpack.c.b16 %v1038, %v1037
        %v1044 = vsel %vm482, %v1019, 0
        %1046 = vmatprep.subr.bf16.mxu0 0
        %1047 = vmatpush1.bf16.msra.mxu0 %v1039
        %1048 = vmatprep.subr.bf16.mxu0 0
        %1049 = vmatpush1.bf16.msra.mxu0 %v1040
        %1050 = vmatprep.subr.bf16.mxu0 0
        %1051 = vmatpush1.bf16.msra.mxu0 0
        %1052 = vmatprep.subr.bf16.mxu0 0
        %1053 = vmatpush1.bf16.msra.mxu0 0
        %1054 = vmatprep.subr.bf16.mxu0 0
        %1055 = vmatpush1.bf16.msra.mxu0 0
        %1056 = vmatprep.subr.bf16.mxu0 0
        %1057 = vmatpush1.bf16.msra.mxu0 0
        %1058 = vmatprep.subr.bf16.mxu0 0
        %1059 = vmatpush1.bf16.msra.mxu0 0
        %1060 = vmatprep.subr.bf16.mxu0 0
        %1061 = vmatpush1.bf16.msra.mxu0 0
        %1062 = vmatprep.subr.bf16.mxu0 0
        %1063 = vmatpush1.bf16.msra.mxu0 0
        %1064 = vmatprep.subr.bf16.mxu0 0
        %1065 = vmatpush1.bf16.msra.mxu0 0
        %1066 = vmatprep.subr.bf16.mxu0 0
        %1067 = vmatpush1.bf16.msra.mxu0 0
        %1068 = vmatprep.subr.bf16.mxu0 0
        %1069 = vmatpush1.bf16.msra.mxu0 0
        %1070 = vmatprep.subr.bf16.mxu0 0
        %1071 = vmatpush1.bf16.msra.mxu0 0
        %1072 = vmatprep.subr.bf16.mxu0 0
        %1073 = vmatpush1.bf16.msra.mxu0 0
        %1074 = vmatprep.subr.bf16.mxu0 0
        %1075 = vmatpush1.bf16.msra.mxu0 0
        %1076 = vmatprep.subr.bf16.mxu0 0
        %1077 = vmatpush1.bf16.msra.mxu0 0
        %1078 = vmatprep.mubr.bf16.mxu0 0
        %1079 = vmatmul.mubr.bf16.gmra.mrb[0].mxu0 %v1044
        %v1080 = vpop.f32.mrb[0].mxu0
        %v1081 = vadd.f32 %v1029, %v1080
        %v1082 = vpop.f32.mrb[0].mxu0
        %v1083 = vpop.f32.mrb[0].mxu0
        %v1084 = vpop.f32.mrb[0].mxu0
        %1085 = vdwg.mxu0
        %1086 = vst.msk [vmem:[%s369] sm:$0xff] %vm482, %v1081
        %s1087 = sand.u32 %s204, 1
        %s1088 = scalar_lea.sflag [#allocation6], %s1087
        %s1089 = sand.u32 %s204, 1
        %s1090 = smul.addr %s1089, 8
        %s1091 = scalar_lea.vmem [#allocation10], %s1090
        %s1092 = sand.u32 %s232, 1
        %s1093 = scalar_lea.sflag [#allocation12], %s1092
        %s1094 = sand.u32 %s232, 1
        %s1095 = smul.addr %s1094, 32
        %s1096 = scalar_lea.vmem [#allocation11], %s1095
        // Predicated region
        $region65: #{tpu_custom_call.1} parent=47 // pred_check
          %p1097 = pneg %p214
        $region66: #{tpu_custom_call.1} parent=47 // pred_check_branch
          %1099 = sbr.rel (%p1097) target = $region68
        $region67: #{tpu_custom_call.1} parent=47 // pred_region
          %s1101 = ssub.s32 128, 128
          %1102 = vsyncadd %s1088, %s1101
          %s1103 = sadd.s32 %s35, %s34
          %s1104 = smul.addr %s1103, 128
          %s1105 = scalar_lea.hbm %s7, %s1104
          %s1107 = sshll.u32 %s1091, 4
          %s1108 = int_to_ptr.vmem [resolvable:$true] %s1107
          %1110 = dma.vmem_to_hbm [thread:$0]  %s1108, 128, %s1105, %s1088
        $region68: #{tpu_custom_call.1} parent=47 // pred_fallthru
          _
        // Predicated region
        $region69: #{tpu_custom_call.1} parent=47 // pred_check
          %p1111 = pneg %p242
        $region70: #{tpu_custom_call.1} parent=47 // pred_check_branch
          %1113 = sbr.rel (%p1111) target = $region72
        $region71: #{tpu_custom_call.1} parent=47 // pred_region
          %s1115 = ssub.s32 512, 512
          %1116 = vsyncadd %s1093, %s1115
          %s1117 = smul.addr %s34, 4
          %s1118 = sadd.s32 %s35, %s1117
          %s1119 = smul.addr %s1118, 128
          %s1120 = scalar_lea.hbm %s8, %s1119
          %s1121 = sshll.u32 %s1096, 4
          %s1122 = int_to_ptr.vmem [resolvable:$true] %s1121
          %1127 = dma.vmem_to_hbm [thread:$0]  %s1122, 512, %s1120, %s1093, 128, 128, 8
        $region72: #{tpu_custom_call.1} parent=47 // pred_fallthru
          _
      $region48: #{tpu_custom_call.1} parent=5 // pred_fallthru
        _
      %p1128 = scmp.le.s32.totalorder 2, %s25
      // Predicated region
      $region73: #{tpu_custom_call.1} parent=5 // pred_check
        %p1129 = pneg %p1128
      $region74: #{tpu_custom_call.1} parent=5 // pred_check_branch
        %1131 = sbr.rel (%p1129) target = $region76
      $region75: #{tpu_custom_call.1} parent=5 // pred_region
        %s1132 = ssub.s32 %s25, 2
        // Predicated region
        $region77: #{tpu_custom_call.1} parent=75 // pred_check
          %p1133 = pneg %p220
        $region78: #{tpu_custom_call.1} parent=75 // pred_check_branch
          %1135 = sbr.rel (%p1133) target = $region80
        $region79: #{tpu_custom_call.1} parent=75 // pred_region
          %s1136 = sand.u32 %s205, 1
          %s1137 = scalar_lea.sflag [#allocation6], %s1136
          %s1138 = sand.u32 %s205, 1
          %s1139 = smul.addr %s1138, 8
          %s1140 = scalar_lea.vmem [#allocation10], %s1139
          %1141 = dma.done %s1137, 128
        $region80: #{tpu_custom_call.1} parent=75 // pred_fallthru
          _
        // Predicated region
        $region81: #{tpu_custom_call.1} parent=75 // pred_check
          %p1142 = pneg %p248
        $region82: #{tpu_custom_call.1} parent=75 // pred_check_branch
          %1144 = sbr.rel (%p1142) target = $region84
        $region83: #{tpu_custom_call.1} parent=75 // pred_region
          %s1145 = sand.u32 %s233, 1
          %s1146 = scalar_lea.sflag [#allocation12], %s1145
          %s1147 = sand.u32 %s233, 1
          %s1148 = smul.addr %s1147, 32
          %s1149 = scalar_lea.vmem [#allocation11], %s1148
          %1150 = dma.done %s1146, 512
        $region84: #{tpu_custom_call.1} parent=75 // pred_fallthru
          _
      $region76: #{tpu_custom_call.1} parent=5 // pred_fallthru
        _
    $region6: #{tpu_custom_call.1} parent=1 // loop_footer
      %s29 = sadd.s32 1, %s25
    $region7: #{tpu_custom_call.1} parent=1 // loop_footer_branch
      %24 = sbr.rel target = $region3
    $region8: #{tpu_custom_call.1} parent=1 // loop_exit
      _
    %1151 = vsyncpa [#allocation5], 1
    %s1152 = scalar_lea.sflag [#allocation5], 1
    %1153 = vsyncpa %s1152, 1
    %1154 = vsyncpa [#allocation8], 1
    %1155 = vsyncpa [#allocation6], 1
    %s1156 = scalar_lea.sflag [#allocation6], 1
    %1157 = vsyncpa %s1156, 1
    %1158 = vsyncpa [#allocation12], 1
    %s1159 = scalar_lea.sflag [#allocation12], 1
    %1160 = vsyncpa %s1159, 1

</llo_original>
